<compile_context>
chip_gen: v7x
topology: tpu7x:2x2x1
jax: 0.10.0
libtpu: 0.0.40
codegen_flags: <defaults>
</compile_context>

<pallas_src>
import functools
import math

import jax
import jax.numpy as jnp
from jax.experimental import pallas as pl
from jax.experimental.pallas import tpu as pltpu

LOG_STD_MIN = -20.0
LOG_STD_MAX = 2.0
NUM_HEADS = 3
K_HEAD = 5          # per-head feature size (fixed by the module: Linear(5, 5*h))
_NEG_BIG = 1e30     # finite "minus infinity" for the masked self-pair logit


def _round_up(x, n):
    return ((x + n - 1) // n) * n


# --------------------------------------------------------------------------
# Pallas kernel: processes b_blk folded batch elements (M = b_blk*T lanes)
# per grid step, neighbours on the sublane axis.
# --------------------------------------------------------------------------
def _actor_kernel(state_ref, nbr_ref, eps_ref, bias_ref,
                  wqk_ref, w1all_ref, w2_ref, b2_ref, whead_ref, bhead_ref,
                  out_ref, xs_ref,
                  *, num_heads, k_head, out_dim, d_pad, xs_rows):
    kk = k_head
    hk = num_heads * kk

    sa = state_ref[0]                       # [d_pad, M]  (features, ones row, zero pad)
    nbr = nbr_ref[0]                        # [4, T, M]   neighbour kinematics
    neg_bias = bias_ref[...]                # [T, M]      -1e30 on self pair, else 0
    m = sa.shape[1]

    # stage [state | 1 | pad] rows of the fused layer-1 input; zero trailing pad
    xs_ref[0:d_pad, :] = sa
    if d_pad + hk < xs_rows:
        xs_ref[d_pad + hk:, :] = jnp.zeros((xs_rows - d_pad - hk, m), jnp.float32)

    # ---- relative pair features: rel[j, i] = state[j of i's batch elem] - state[i]
    dx = nbr[0] - sa[0:1, :]                # [T, M]
    dy = nbr[1] - sa[1:2, :]
    dvx = nbr[2] - sa[2:3, :]
    dvy = nbr[3] - sa[3:4, :]

    is_self = neg_bias < -1.0
    r = jnp.sqrt(dx * dx + dy * dy)
    r_safe = jnp.where(is_self, 1.0, r)     # avoid 0/0 NaN on the masked diagonal
    inv_r = pl.reciprocal(r_safe, approx=True)
    r_trans = pl.reciprocal(1.0 + jnp.exp(-1.0 + 5.0 * (r - 0.2)), approx=True)
    rel5 = (dx * inv_r, dy * inv_r, dvx, dvy, r_trans)   # 5 single-vreg planes

    # ---- fused query/key projection (Wq^T Wk pre-folded), transposed: [hk, M]
    qk_t = jnp.dot(wqk_ref[...], sa, preferred_element_type=jnp.float32)
    inv_sqrt_k = 1.0 / math.sqrt(float(kk))

    # ---- per-head masked softmax; attention-weighted rel5 sums go straight
    #      into the fused layer-1 scratch rows (no concatenations).
    for hh in range(num_heads):
        wp = rel5[0] * qk_t[hh * kk:hh * kk + 1, :]        # [1,M] sublane-broadcast
        for c in range(1, kk):
            wp = wp + rel5[c] * qk_t[hh * kk + c:hh * kk + c + 1, :]
        logits = wp * inv_sqrt_k + neg_bias
        mx = jnp.max(logits, axis=0, keepdims=True)        # [1, M]
        e = jnp.exp(logits - mx)                           # exactly 0 on self pair
        inv_den = 1.0 / jnp.sum(e, axis=0, keepdims=True)  # exact reciprocal
        for c in range(kk):
            row = d_pad + hh * kk + c
            xs_ref[row:row + 1, :] = (
                jnp.sum(e * rel5[c], axis=0, keepdims=True) * inv_den)

    # ---- fused MLP layer 1: W1all @ [state | 1 | s] (Wv, b1, state path folded)
    h1 = jnp.maximum(
        jnp.dot(w1all_ref[...], xs_ref[...], preferred_element_type=jnp.float32),
        0.0)                                               # [H, M]
    h2 = jnp.maximum(
        jnp.dot(w2_ref[...], h1, preferred_element_type=jnp.float32) + b2_ref[...],
        0.0)                                               # [H, M]
    heads = (jnp.dot(whead_ref[...], h2, preferred_element_type=jnp.float32)
             + bhead_ref[...])                             # [2*out, M]

    # ---- fused mu / log_std heads + tanh-squashed Gaussian -----------------
    mu = jnp.tanh(heads[0:out_dim, :])
    ls = jnp.tanh(heads[out_dim:2 * out_dim, :])
    log_std = LOG_STD_MIN + 0.5 * (LOG_STD_MAX - LOG_STD_MIN) * (ls + 1.0)
    std = jnp.exp(log_std)

    eps = eps_ref[0]                                       # [out, M]
    z = mu + std * eps                                     # rsample
    action = jnp.tanh(z)
    # (z - mu)/std == eps exactly -> use eps directly in the Gaussian term.
    logp = (-0.5 * eps * eps - log_std - 0.5 * math.log(2.0 * math.pi)
            - jnp.log(1.0 - action * action + 1e-7))
    lp = jnp.sum(logp, axis=0, keepdims=True)              # [1, M]

    # single lane-dense output slab: rows = [action ; log_prob], lanes = M
    out_ref[0] = jnp.concatenate([action, lp], axis=0)     # [out_dim + 1, M]


# --------------------------------------------------------------------------
# One-time weight preparation (outside the per-call path)
# --------------------------------------------------------------------------
def prepare_weights(params, num_heads=NUM_HEADS):
    f32 = jnp.float32
    k = K_HEAD
    hk = k * num_heads
    d = params['wq'].shape[1]
    hdim = params['w1'].shape[0]
    d_pad = _round_up(d + 1, 8)
    xs_rows = _round_up(d_pad + hk, 8)

    wq = params['wq'].astype(f32)
    wk = params['wk'].astype(f32)
    wv = params['wv'].astype(f32)
    w1 = params['w1'].astype(f32)

    # toqueries folded with tokeys, transposed:  qk_t = (Wk_h^T Wq_h) @ state_t
    wqk_t = jnp.concatenate(
        [wk[h * k:(h + 1) * k, :].T @ wq[h * k:(h + 1) * k, :]
         for h in range(num_heads)], axis=0)                         # [hk, d]
    wqk_t = jnp.concatenate(
        [wqk_t, jnp.zeros((hk, d_pad - d), f32)], axis=1)            # [hk, d_pad]

    # tovalues folded with the attention slice of layer 1
    wsv = jnp.concatenate(
        [w1[:, h * k:(h + 1) * k] @ wv[h * k:(h + 1) * k, :]
         for h in range(num_heads)], axis=1)                         # [H, hk]

    cols = [w1[:, hk:hk + d],                                        # state path
            params['b1'].astype(f32).reshape(-1, 1)]                 # bias (ones row)
    if d_pad > d + 1:
        cols.append(jnp.zeros((hdim, d_pad - d - 1), f32))
    cols.append(wsv)
    if xs_rows > d_pad + hk:
        cols.append(jnp.zeros((hdim, xs_rows - d_pad - hk), f32))
    w1all = jnp.concatenate(cols, axis=1)                            # [H, xs_rows]

    w2 = params['w2'].astype(f32)                                    # [H, H]
    b2 = params['b2'].astype(f32).reshape(-1, 1)                     # [H, 1]
    whead = jnp.concatenate([params['wmu'], params['wls']],
                            axis=0).astype(f32)                      # [2*out, H]
    bhead = jnp.concatenate([params['bmu'], params['bls']]
                            ).astype(f32).reshape(-1, 1)             # [2*out, 1]
    return (wqk_t, w1all, w2, b2, whead, bhead)


# --------------------------------------------------------------------------
# Per-generation fold size: fill the 256-wide MXU on v6e; M=128 elsewhere
# (v5e MXU is 128 wide; v7x wants >=2 parallel grid steps for its 2 TCs).
# --------------------------------------------------------------------------
def _pick_b_blk(b, t):
    kind = ""
    try:
        kind = jax.devices()[0].device_kind.lower()
    except Exception:
        pass
    target_m = 256 if "v6" in kind else 128
    b_blk = max(1, min(b, max(1, target_m // max(t, 1))))
    return max(1, math.gcd(b_blk, b))


# --------------------------------------------------------------------------
# Wrapper: batch folding + lane-dense layout plumbing + pallas_call
# --------------------------------------------------------------------------
@functools.partial(jax.jit, static_argnames=("b_blk",))
def actor_forward(state, eps, prepared, *, b_blk=16):
    b, t, d = state.shape
    out_dim = eps.shape[-1]
    d_pad = _round_up(d + 1, 8)
    hk = NUM_HEADS * K_HEAD
    xs_rows = _round_up(d_pad + hk, 8)

    b_blk = max(1, math.gcd(b_blk, b))
    g = b // b_blk
    m = b_blk * t

    state = state.astype(jnp.float32)
    eps = eps.astype(jnp.float32)

    # self view: features on sublanes, folded rows on lanes, plus ones + zero pad rows
    state_t = jnp.transpose(state.reshape(g, m, d), (0, 2, 1))          # (g, d, m)
    aug = [state_t, jnp.ones((g, 1, m), jnp.float32)]
    if d_pad > d + 1:
        aug.append(jnp.zeros((g, d_pad - d - 1, m), jnp.float32))
    state_aug = jnp.concatenate(aug, axis=1)                            # (g, d_pad, m)

    # neighbour view: nbr[g, c, j, i] = feature c of agent j in row i's batch element
    feats = jnp.transpose(state.reshape(g, b_blk, t, d)[..., 0:4], (0, 3, 2, 1))
    nbr = jnp.broadcast_to(feats[..., None],
                           (g, 4, t, b_blk, t)).reshape(g, 4, t, m)     # (g, 4, t, m)

    eps_t = jnp.transpose(eps.reshape(g, m, out_dim), (0, 2, 1))        # (g, out, m)

    # additive -1e30 bias on the self pair (j == i mod t)
    lane_agent = jnp.arange(m, dtype=jnp.int32) % t
    sub_agent = jnp.arange(t, dtype=jnp.int32)
    neg_bias = jnp.where(sub_agent[:, None] == lane_agent[None, :],
                         jnp.float32(-_NEG_BIG), jnp.float32(0.0))      # (t, m)

    wqk_t, w1all, w2, b2, whead, bhead = prepared
    assert w1all.shape[1] == xs_rows and wqk_t.shape == (hk, d_pad)

    kernel = functools.partial(_actor_kernel, num_heads=NUM_HEADS, k_head=K_HEAD,
                               out_dim=out_dim, d_pad=d_pad, xs_rows=xs_rows)

    grid_spec = pltpu.PrefetchScalarGridSpec(
        num_scalar_prefetch=0,
        grid=(g,),
        in_specs=[
            pl.BlockSpec((1, d_pad, m), lambda i: (i, 0, 0)),           # state (+1,+pad)
            pl.BlockSpec((1, 4, t, m), lambda i: (i, 0, 0, 0)),         # neighbour view
            pl.BlockSpec((1, out_dim, m), lambda i: (i, 0, 0)),         # eps (transposed)
            pl.BlockSpec((t, m), lambda i: (0, 0)),                     # self-pair bias
            pl.BlockSpec(wqk_t.shape, lambda i: (0, 0)),
            pl.BlockSpec(w1all.shape, lambda i: (0, 0)),
            pl.BlockSpec(w2.shape, lambda i: (0, 0)),
            pl.BlockSpec(b2.shape, lambda i: (0, 0)),
            pl.BlockSpec(whead.shape, lambda i: (0, 0)),
            pl.BlockSpec(bhead.shape, lambda i: (0, 0)),
        ],
        out_specs=pl.BlockSpec((1, out_dim + 1, m), lambda i: (i, 0, 0)),
        scratch_shapes=[pltpu.VMEM((xs_rows, m), jnp.float32)],
    )

    packed = pl.pallas_call(
        kernel,
        out_shape=jax.ShapeDtypeStruct((g, out_dim + 1, m), jnp.float32),
        grid_spec=grid_spec,
        compiler_params=pltpu.CompilerParams(
            dimension_semantics=("parallel",)),
    )(state_aug, nbr, eps_t, neg_bias, wqk_t, w1all, w2, b2, whead, bhead)

    packed = jnp.transpose(packed, (0, 2, 1)).reshape(b, t, out_dim + 1)
    return packed[..., :out_dim], packed[..., out_dim:]


# --------------------------------------------------------------------------
# Pure-JAX reference (mirrors the PyTorch RelDistTransformerActor forward)
# --------------------------------------------------------------------------
def reference_forward(state, eps, params):
    b, t, d = state.shape
    h = params['wq'].shape[0] // K_HEAD
    k = K_HEAD

    rel_init = state[:, :, 0:4]
    rel = rel_init[:, None, :, :] - rel_init[:, :, None, :]        # [b,t,t,4]

    nbr = jnp.array([[j for j in range(t) if j != i] for i in range(t)],
                    dtype=jnp.int32)                                # [t, t-1]
    rows = jnp.arange(t, dtype=jnp.int32)[:, None]
    rel = rel[:, rows, nbr, :]                                      # [b,t,t-1,4]

    r = jnp.sqrt(rel[..., 0] ** 2 + rel[..., 1] ** 2)[..., None]
    r_trans = 1.0 / (1.0 + jnp.exp(-1.0 + 5.0 * (r - 0.2)))
    rel5 = jnp.concatenate([rel[..., 0:2] / r, rel[..., 2:4], r_trans], axis=-1)

    q = (state @ params['wq'].T).reshape(b, t, h, k)
    kk = (rel5.reshape(b, t * (t - 1), k) @ params['wk'].T).reshape(b, t * (t - 1), h, k)
    vv = (rel5.reshape(b, t * (t - 1), k) @ params['wv'].T).reshape(b, t * (t - 1), h, k)

    q = jnp.swapaxes(q, 1, 2).reshape(b * h, t, k)[:, :, :, None]   # [b*h,t,k,1]
    kk = jnp.swapaxes(kk, 1, 2).reshape(b * h, t, t - 1, k)
    vv = jnp.swapaxes(vv, 1, 2).reshape(b * h, t, t - 1, k)

    w_prime = jnp.matmul(kk, q) / (k ** 0.5)                        # [b*h,t,t-1,1]
    w = jax.nn.softmax(w_prime, axis=2)
    x = jnp.matmul(jnp.swapaxes(w, 2, 3), vv).reshape(b * h, t, k)
    x = jnp.swapaxes(x.reshape(b, h, t, k), 1, 2).reshape(b, t, h * k)
    x = jnp.concatenate([x, state], axis=2)

    x = jax.nn.relu(x @ params['w1'].T + params['b1'])
    x = jax.nn.relu(x @ params['w2'].T + params['b2'])
    mu = jnp.tanh(x @ params['wmu'].T + params['bmu'])
    ls = jnp.tanh(x @ params['wls'].T + params['bls'])
    log_std = LOG_STD_MIN + 0.5 * (LOG_STD_MAX - LOG_STD_MIN) * (ls + 1.0)
    std = jnp.exp(log_std)
    z = mu + std * eps
    action = jnp.tanh(z)
    logp = (-((z - mu) ** 2) / (2.0 * std ** 2) - jnp.log(std)
            - 0.5 * jnp.log(2.0 * jnp.pi)
            - jnp.log(1.0 - action ** 2 + 1e-7))
    return action, jnp.sum(logp, axis=-1, keepdims=True)


# --------------------------------------------------------------------------
# Deterministic parameter init (mimics nn.Linear default + init_layer_uniform)
# --------------------------------------------------------------------------
def make_params(key, in_dim, out_dim, num_heads, hidden_dim):
    hk = K_HEAD * num_heads
    mlp_in = hk + in_dim
    ks = jax.random.split(key, 11)

    def u(kkey, shape, bound):
        return jax.random.uniform(kkey, shape, jnp.float32, -bound, bound)

    return {
        'wq': u(ks[0], (hk, in_dim), 1.0 / math.sqrt(in_dim)),
        'wk': u(ks[1], (hk, K_HEAD), 1.0 / math.sqrt(K_HEAD)),
        'wv': u(ks[2], (hk, K_HEAD), 1.0 / math.sqrt(K_HEAD)),
        'w1': u(ks[3], (hidden_dim, mlp_in), 1.0 / math.sqrt(mlp_in)),
        'b1': u(ks[4], (hidden_dim,), 1.0 / math.sqrt(mlp_in)),
        'w2': u(ks[5], (hidden_dim, hidden_dim), 1.0 / math.sqrt(hidden_dim)),
        'b2': u(ks[6], (hidden_dim,), 1.0 / math.sqrt(hidden_dim)),
        'wmu': u(ks[7], (out_dim, hidden_dim), 0.003),
        'bmu': u(ks[8], (out_dim,), 0.003),
        'wls': u(ks[9], (out_dim, hidden_dim), 0.003),
        'bls': u(ks[10], (out_dim,), 0.003),
    }


if __name__ == "__main__":
    b, t = 32, 8                # batch, n_agents
    in_dim, out_dim = 8, 2
    hidden_dim = 256            # module default

    root = jax.random.PRNGKey(0)
    k_par, k_state, k_eps = jax.random.split(root, 3)
    params = make_params(k_par, in_dim, out_dim, NUM_HEADS, hidden_dim)
    state = jax.random.normal(k_state, (b, t, in_dim), jnp.float32)
    eps = jax.random.normal(k_eps, (b, t, out_dim), jnp.float32)   # rsample noise

    prepared = prepare_weights(params)
    b_blk = _pick_b_blk(b, t)
    action, log_prob = jax.block_until_ready(
        actor_forward(state, eps, prepared, b_blk=b_blk))

    a_ref, lp_ref = reference_forward(state, eps, params)

    assert action.shape == (b, t, out_dim)
    assert log_prob.shape == (b, t, 1)
    assert bool(jnp.all(jnp.isfinite(action))) and bool(jnp.all(jnp.isfinite(log_prob)))
    assert jnp.allclose(action, a_ref, atol=1e-3, rtol=1e-2), \
        float(jnp.max(jnp.abs(action - a_ref)))
    assert jnp.allclose(log_prob, lp_ref, atol=1e-2, rtol=1e-2), \
        float(jnp.max(jnp.abs(log_prob - lp_ref)))

    print("KERNEL_OK")
</pallas_src>

<mosaic_0001>
module attributes {stable_mosaic.version = 11 : i64} {
  func.func @_actor_kernel(%arg0: i32, %arg1: memref<1x16x128xf32, #tpu.memory_space<vmem>>, %arg2: memref<1x4x8x128xf32, #tpu.memory_space<vmem>>, %arg3: memref<1x2x128xf32, #tpu.memory_space<vmem>>, %arg4: memref<8x128xf32, #tpu.memory_space<vmem>>, %arg5: memref<15x16xf32, #tpu.memory_space<vmem>>, %arg6: memref<256x32xf32, #tpu.memory_space<vmem>>, %arg7: memref<256x256xf32, #tpu.memory_space<vmem>>, %arg8: memref<256x1xf32, #tpu.memory_space<vmem>>, %arg9: memref<4x256xf32, #tpu.memory_space<vmem>>, %arg10: memref<4x1xf32, #tpu.memory_space<vmem>>, %arg11: memref<1x3x128xf32, #tpu.memory_space<vmem>>, %arg12: memref<32x128xf32, #tpu.memory_space<vmem>>) attributes {dimension_semantics = [#tpu.dimension_semantics<parallel>], iteration_bounds = array<i64: 2>, scalar_prefetch = 0 : i64, scratch_operands = 1 : i64, tpu.core_type = #tpu.core_type<tc>, window_params = [{transform_indices = @transform_0, window_bounds = array<i64: 1, 16, 128>}, {transform_indices = @transform_1, window_bounds = array<i64: 1, 4, 8, 128>}, {transform_indices = @transform_2, window_bounds = array<i64: 1, 2, 128>}, {pipeline_mode = #tpu.pipeline_mode<synchronous>, transform_indices = @transform_3, window_bounds = array<i64: 8, 128>}, {pipeline_mode = #tpu.pipeline_mode<synchronous>, transform_indices = @transform_4, window_bounds = array<i64: 15, 16>}, {pipeline_mode = #tpu.pipeline_mode<synchronous>, transform_indices = @transform_5, window_bounds = array<i64: 256, 32>}, {pipeline_mode = #tpu.pipeline_mode<synchronous>, transform_indices = @transform_6, window_bounds = array<i64: 256, 256>}, {pipeline_mode = #tpu.pipeline_mode<synchronous>, transform_indices = @transform_7, window_bounds = array<i64: 256, 1>}, {pipeline_mode = #tpu.pipeline_mode<synchronous>, transform_indices = @transform_8, window_bounds = array<i64: 4, 256>}, {pipeline_mode = #tpu.pipeline_mode<synchronous>, transform_indices = @transform_9, window_bounds = array<i64: 4, 1>}, {transform_indices = @transform_10, window_bounds = array<i64: 1, 3, 128>}]} {
    %c0 = arith.constant 0 : index
    %c0_0 = arith.constant 0 : index
    %c0_1 = arith.constant 0 : index
    %0 = vector.load %arg1[%c0, %c0_0, %c0_1] : memref<1x16x128xf32, #tpu.memory_space<vmem>>, vector<1x16x128xf32>
    %1 = vector.shape_cast %0 : vector<1x16x128xf32> to vector<16x128xf32>
    %c0_2 = arith.constant 0 : index
    %c0_3 = arith.constant 0 : index
    %c0_4 = arith.constant 0 : index
    %c0_5 = arith.constant 0 : index
    %2 = vector.load %arg2[%c0_2, %c0_3, %c0_4, %c0_5] : memref<1x4x8x128xf32, #tpu.memory_space<vmem>>, vector<1x4x8x128xf32>
    %3 = vector.shape_cast %2 : vector<1x4x8x128xf32> to vector<4x8x128xf32>
    %c0_6 = arith.constant 0 : index
    %c0_7 = arith.constant 0 : index
    %4 = vector.load %arg4[%c0_6, %c0_7] : memref<8x128xf32, #tpu.memory_space<vmem>>, vector<8x128xf32>
    %c0_8 = arith.constant 0 : index
    %c0_9 = arith.constant 0 : index
    %5 = vector.load %arg12[%c0_8, %c0_9] : memref<32x128xf32, #tpu.memory_space<vmem>>, vector<16x128xf32>
    tpu.vector_store %arg12[%c0_8, %c0_9], %1 {strides = array<i32>} : memref<32x128xf32, #tpu.memory_space<vmem>>, vector<16x128xf32>,
    %cst = arith.constant 0.000000e+00 : f32
    %6 = vector.broadcast %cst : f32 to vector<1x128xf32>
    %c31 = arith.constant 31 : index
    %c0_10 = arith.constant 0 : index
    %7 = vector.load %arg12[%c31, %c0_10] : memref<32x128xf32, #tpu.memory_space<vmem>>, vector<1x128xf32>
    tpu.vector_store %arg12[%c31, %c0_10], %6 {strides = array<i32>} : memref<32x128xf32, #tpu.memory_space<vmem>>, vector<1x128xf32>,
    %8 = vector.extract_strided_slice %3 {offsets = [0, 0, 0], sizes = [1, 8, 128], strides = [1, 1, 1]} : vector<4x8x128xf32> to vector<1x8x128xf32>
    %9 = vector.shape_cast %8 : vector<1x8x128xf32> to vector<8x128xf32>
    %10 = vector.extract_strided_slice %1 {offsets = [0, 0], sizes = [1, 128], strides = [1, 1]} : vector<16x128xf32> to vector<1x128xf32>
    %11 = vector.broadcast %10 : vector<1x128xf32> to vector<8x128xf32>
    %12 = arith.subf %9, %11 : vector<8x128xf32>
    %13 = vector.extract_strided_slice %3 {offsets = [1, 0, 0], sizes = [1, 8, 128], strides = [1, 1, 1]} : vector<4x8x128xf32> to vector<1x8x128xf32>
    %14 = vector.shape_cast %13 : vector<1x8x128xf32> to vector<8x128xf32>
    %15 = vector.extract_strided_slice %1 {offsets = [1, 0], sizes = [1, 128], strides = [1, 1]} : vector<16x128xf32> to vector<1x128xf32>
    %16 = vector.broadcast %15 : vector<1x128xf32> to vector<8x128xf32>
    %17 = arith.subf %14, %16 : vector<8x128xf32>
    %18 = vector.extract_strided_slice %3 {offsets = [2, 0, 0], sizes = [1, 8, 128], strides = [1, 1, 1]} : vector<4x8x128xf32> to vector<1x8x128xf32>
    %19 = vector.shape_cast %18 : vector<1x8x128xf32> to vector<8x128xf32>
    %20 = vector.extract_strided_slice %1 {offsets = [2, 0], sizes = [1, 128], strides = [1, 1]} : vector<16x128xf32> to vector<1x128xf32>
    %21 = vector.broadcast %20 : vector<1x128xf32> to vector<8x128xf32>
    %22 = arith.subf %19, %21 : vector<8x128xf32>
    %23 = vector.extract_strided_slice %3 {offsets = [3, 0, 0], sizes = [1, 8, 128], strides = [1, 1, 1]} : vector<4x8x128xf32> to vector<1x8x128xf32>
    %24 = vector.shape_cast %23 : vector<1x8x128xf32> to vector<8x128xf32>
    %25 = vector.extract_strided_slice %1 {offsets = [3, 0], sizes = [1, 128], strides = [1, 1]} : vector<16x128xf32> to vector<1x128xf32>
    %26 = vector.broadcast %25 : vector<1x128xf32> to vector<8x128xf32>
    %27 = arith.subf %24, %26 : vector<8x128xf32>
    %cst_11 = arith.constant -1.000000e+00 : f32
    %28 = vector.broadcast %cst_11 : f32 to vector<8x128xf32>
    %29 = arith.cmpf olt, %4, %28 : vector<8x128xf32>
    %30 = arith.mulf %12, %12 : vector<8x128xf32>
    %31 = arith.mulf %17, %17 : vector<8x128xf32>
    %32 = arith.addf %30, %31 : vector<8x128xf32>
    %33 = math.sqrt %32 : vector<8x128xf32>
    %cst_12 = arith.constant 1.000000e+00 : f32
    %34 = vector.broadcast %cst_12 : f32 to vector<8x128xf32>
    %35 = arith.select %29, %34, %33 : vector<8x128xi1>, vector<8x128xf32>
    %36 = tpu.reciprocal %35 {approx = true} : vector<8x128xf32> -> vector<8x128xf32>
    %cst_13 = arith.constant 2.000000e-01 : f32
    %37 = vector.broadcast %cst_13 : f32 to vector<8x128xf32>
    %38 = arith.subf %33, %37 : vector<8x128xf32>
    %cst_14 = arith.constant 5.000000e+00 : f32
    %39 = vector.broadcast %cst_14 : f32 to vector<8x128xf32>
    %40 = arith.mulf %39, %38 : vector<8x128xf32>
    %cst_15 = arith.constant -1.000000e+00 : f32
    %41 = vector.broadcast %cst_15 : f32 to vector<8x128xf32>
    %42 = arith.addf %41, %40 : vector<8x128xf32>
    %43 = math.exp %42 : vector<8x128xf32>
    %cst_16 = arith.constant 1.000000e+00 : f32
    %44 = vector.broadcast %cst_16 : f32 to vector<8x128xf32>
    %45 = arith.addf %44, %43 : vector<8x128xf32>
    %46 = tpu.reciprocal %45 {approx = true} : vector<8x128xf32> -> vector<8x128xf32>
    %47 = arith.mulf %12, %36 : vector<8x128xf32>
    %48 = arith.mulf %17, %36 : vector<8x128xf32>
    %c0_17 = arith.constant 0 : index
    %c0_18 = arith.constant 0 : index
    %49 = vector.load %arg5[%c0_17, %c0_18] : memref<15x16xf32, #tpu.memory_space<vmem>>, vector<15x16xf32>
    %cst_19 = arith.constant dense<0.000000e+00> : vector<15x128xf32>
    %50 = tpu.matmul %49, %1, %cst_19 {dimension_numbers = #tpu.dot_dimension_numbers<[1], [0], [0], [1], [0, 0, 1, 1], [], []>} : vector<15x16xf32>, vector<16x128xf32>, vector<15x128xf32> -> vector<15x128xf32>
    %51 = vector.extract_strided_slice %50 {offsets = [0, 0], sizes = [1, 128], strides = [1, 1]} : vector<15x128xf32> to vector<1x128xf32>
    %52 = vector.broadcast %51 : vector<1x128xf32> to vector<8x128xf32>
    %53 = arith.mulf %47, %52 : vector<8x128xf32>
    %54 = vector.extract_strided_slice %50 {offsets = [1, 0], sizes = [1, 128], strides = [1, 1]} : vector<15x128xf32> to vector<1x128xf32>
    %55 = vector.broadcast %54 : vector<1x128xf32> to vector<8x128xf32>
    %56 = arith.mulf %48, %55 : vector<8x128xf32>
    %57 = arith.addf %53, %56 : vector<8x128xf32>
    %58 = vector.extract_strided_slice %50 {offsets = [2, 0], sizes = [1, 128], strides = [1, 1]} : vector<15x128xf32> to vector<1x128xf32>
    %59 = vector.broadcast %58 : vector<1x128xf32> to vector<8x128xf32>
    %60 = arith.mulf %22, %59 : vector<8x128xf32>
    %61 = arith.addf %57, %60 : vector<8x128xf32>
    %62 = vector.extract_strided_slice %50 {offsets = [3, 0], sizes = [1, 128], strides = [1, 1]} : vector<15x128xf32> to vector<1x128xf32>
    %63 = vector.broadcast %62 : vector<1x128xf32> to vector<8x128xf32>
    %64 = arith.mulf %27, %63 : vector<8x128xf32>
    %65 = arith.addf %61, %64 : vector<8x128xf32>
    %66 = vector.extract_strided_slice %50 {offsets = [4, 0], sizes = [1, 128], strides = [1, 1]} : vector<15x128xf32> to vector<1x128xf32>
    %67 = vector.broadcast %66 : vector<1x128xf32> to vector<8x128xf32>
    %68 = arith.mulf %46, %67 : vector<8x128xf32>
    %69 = arith.addf %65, %68 : vector<8x128xf32>
    %cst_20 = arith.constant 0.44721359 : f32
    %70 = vector.broadcast %cst_20 : f32 to vector<8x128xf32>
    %71 = arith.mulf %69, %70 : vector<8x128xf32>
    %72 = arith.addf %71, %4 : vector<8x128xf32>
    %cst_21 = arith.constant dense<0xFF800000> : vector<128xf32>
    %73 = vector.multi_reduction <maximumf>, %72, %cst_21 [0] : vector<8x128xf32> to vector<128xf32>
    %74 = vector.shape_cast %73 : vector<128xf32> to vector<1x128xf32>
    %75 = vector.broadcast %74 : vector<1x128xf32> to vector<8x128xf32>
    %76 = arith.subf %72, %75 : vector<8x128xf32>
    %77 = math.exp %76 : vector<8x128xf32>
    %cst_22 = arith.constant dense<0.000000e+00> : vector<128xf32>
    %78 = vector.multi_reduction <add>, %77, %cst_22 [0] : vector<8x128xf32> to vector<128xf32>
    %79 = vector.shape_cast %78 : vector<128xf32> to vector<1x128xf32>
    %cst_23 = arith.constant 1.000000e+00 : f32
    %80 = vector.broadcast %cst_23 : f32 to vector<1x128xf32>
    %81 = arith.divf %80, %79 : vector<1x128xf32>
    %82 = arith.mulf %77, %47 : vector<8x128xf32>
    %cst_24 = arith.constant dense<0.000000e+00> : vector<128xf32>
    %83 = vector.multi_reduction <add>, %82, %cst_24 [0] : vector<8x128xf32> to vector<128xf32>
    %84 = vector.shape_cast %83 : vector<128xf32> to vector<1x128xf32>
    %85 = arith.mulf %84, %81 : vector<1x128xf32>
    %c16 = arith.constant 16 : index
    %c0_25 = arith.constant 0 : index
    %86 = vector.load %arg12[%c16, %c0_25] : memref<32x128xf32, #tpu.memory_space<vmem>>, vector<1x128xf32>
    tpu.vector_store %arg12[%c16, %c0_25], %85 {strides = array<i32>} : memref<32x128xf32, #tpu.memory_space<vmem>>, vector<1x128xf32>,
    %87 = arith.mulf %77, %48 : vector<8x128xf32>
    %cst_26 = arith.constant dense<0.000000e+00> : vector<128xf32>
    %88 = vector.multi_reduction <add>, %87, %cst_26 [0] : vector<8x128xf32> to vector<128xf32>
    %89 = vector.shape_cast %88 : vector<128xf32> to vector<1x128xf32>
    %90 = arith.mulf %89, %81 : vector<1x128xf32>
    %c17 = arith.constant 17 : index
    %c0_27 = arith.constant 0 : index
    %91 = vector.load %arg12[%c17, %c0_27] : memref<32x128xf32, #tpu.memory_space<vmem>>, vector<1x128xf32>
    tpu.vector_store %arg12[%c17, %c0_27], %90 {strides = array<i32>} : memref<32x128xf32, #tpu.memory_space<vmem>>, vector<1x128xf32>,
    %92 = arith.mulf %77, %22 : vector<8x128xf32>
    %cst_28 = arith.constant dense<0.000000e+00> : vector<128xf32>
    %93 = vector.multi_reduction <add>, %92, %cst_28 [0] : vector<8x128xf32> to vector<128xf32>
    %94 = vector.shape_cast %93 : vector<128xf32> to vector<1x128xf32>
    %95 = arith.mulf %94, %81 : vector<1x128xf32>
    %c18 = arith.constant 18 : index
    %c0_29 = arith.constant 0 : index
    %96 = vector.load %arg12[%c18, %c0_29] : memref<32x128xf32, #tpu.memory_space<vmem>>, vector<1x128xf32>
    tpu.vector_store %arg12[%c18, %c0_29], %95 {strides = array<i32>} : memref<32x128xf32, #tpu.memory_space<vmem>>, vector<1x128xf32>,
    %97 = arith.mulf %77, %27 : vector<8x128xf32>
    %cst_30 = arith.constant dense<0.000000e+00> : vector<128xf32>
    %98 = vector.multi_reduction <add>, %97, %cst_30 [0] : vector<8x128xf32> to vector<128xf32>
    %99 = vector.shape_cast %98 : vector<128xf32> to vector<1x128xf32>
    %100 = arith.mulf %99, %81 : vector<1x128xf32>
    %c19 = arith.constant 19 : index
    %c0_31 = arith.constant 0 : index
    %101 = vector.load %arg12[%c19, %c0_31] : memref<32x128xf32, #tpu.memory_space<vmem>>, vector<1x128xf32>
    tpu.vector_store %arg12[%c19, %c0_31], %100 {strides = array<i32>} : memref<32x128xf32, #tpu.memory_space<vmem>>, vector<1x128xf32>,
    %102 = arith.mulf %77, %46 : vector<8x128xf32>
    %cst_32 = arith.constant dense<0.000000e+00> : vector<128xf32>
    %103 = vector.multi_reduction <add>, %102, %cst_32 [0] : vector<8x128xf32> to vector<128xf32>
    %104 = vector.shape_cast %103 : vector<128xf32> to vector<1x128xf32>
    %105 = arith.mulf %104, %81 : vector<1x128xf32>
    %c20 = arith.constant 20 : index
    %c0_33 = arith.constant 0 : index
    %106 = vector.load %arg12[%c20, %c0_33] : memref<32x128xf32, #tpu.memory_space<vmem>>, vector<1x128xf32>
    tpu.vector_store %arg12[%c20, %c0_33], %105 {strides = array<i32>} : memref<32x128xf32, #tpu.memory_space<vmem>>, vector<1x128xf32>,
    %107 = vector.extract_strided_slice %50 {offsets = [5, 0], sizes = [1, 128], strides = [1, 1]} : vector<15x128xf32> to vector<1x128xf32>
    %108 = vector.broadcast %107 : vector<1x128xf32> to vector<8x128xf32>
    %109 = arith.mulf %47, %108 : vector<8x128xf32>
    %110 = vector.extract_strided_slice %50 {offsets = [6, 0], sizes = [1, 128], strides = [1, 1]} : vector<15x128xf32> to vector<1x128xf32>
    %111 = vector.broadcast %110 : vector<1x128xf32> to vector<8x128xf32>
    %112 = arith.mulf %48, %111 : vector<8x128xf32>
    %113 = arith.addf %109, %112 : vector<8x128xf32>
    %114 = vector.extract_strided_slice %50 {offsets = [7, 0], sizes = [1, 128], strides = [1, 1]} : vector<15x128xf32> to vector<1x128xf32>
    %115 = vector.broadcast %114 : vector<1x128xf32> to vector<8x128xf32>
    %116 = arith.mulf %22, %115 : vector<8x128xf32>
    %117 = arith.addf %113, %116 : vector<8x128xf32>
    %118 = vector.extract_strided_slice %50 {offsets = [8, 0], sizes = [1, 128], strides = [1, 1]} : vector<15x128xf32> to vector<1x128xf32>
    %119 = vector.broadcast %118 : vector<1x128xf32> to vector<8x128xf32>
    %120 = arith.mulf %27, %119 : vector<8x128xf32>
    %121 = arith.addf %117, %120 : vector<8x128xf32>
    %122 = vector.extract_strided_slice %50 {offsets = [9, 0], sizes = [1, 128], strides = [1, 1]} : vector<15x128xf32> to vector<1x128xf32>
    %123 = vector.broadcast %122 : vector<1x128xf32> to vector<8x128xf32>
    %124 = arith.mulf %46, %123 : vector<8x128xf32>
    %125 = arith.addf %121, %124 : vector<8x128xf32>
    %cst_34 = arith.constant 0.44721359 : f32
    %126 = vector.broadcast %cst_34 : f32 to vector<8x128xf32>
    %127 = arith.mulf %125, %126 : vector<8x128xf32>
    %128 = arith.addf %127, %4 : vector<8x128xf32>
    %cst_35 = arith.constant dense<0xFF800000> : vector<128xf32>
    %129 = vector.multi_reduction <maximumf>, %128, %cst_35 [0] : vector<8x128xf32> to vector<128xf32>
    %130 = vector.shape_cast %129 : vector<128xf32> to vector<1x128xf32>
    %131 = vector.broadcast %130 : vector<1x128xf32> to vector<8x128xf32>
    %132 = arith.subf %128, %131 : vector<8x128xf32>
    %133 = math.exp %132 : vector<8x128xf32>
    %cst_36 = arith.constant dense<0.000000e+00> : vector<128xf32>
    %134 = vector.multi_reduction <add>, %133, %cst_36 [0] : vector<8x128xf32> to vector<128xf32>
    %135 = vector.shape_cast %134 : vector<128xf32> to vector<1x128xf32>
    %cst_37 = arith.constant 1.000000e+00 : f32
    %136 = vector.broadcast %cst_37 : f32 to vector<1x128xf32>
    %137 = arith.divf %136, %135 : vector<1x128xf32>
    %138 = arith.mulf %133, %47 : vector<8x128xf32>
    %cst_38 = arith.constant dense<0.000000e+00> : vector<128xf32>
    %139 = vector.multi_reduction <add>, %138, %cst_38 [0] : vector<8x128xf32> to vector<128xf32>
    %140 = vector.shape_cast %139 : vector<128xf32> to vector<1x128xf32>
    %141 = arith.mulf %140, %137 : vector<1x128xf32>
    %c21 = arith.constant 21 : index
    %c0_39 = arith.constant 0 : index
    %142 = vector.load %arg12[%c21, %c0_39] : memref<32x128xf32, #tpu.memory_space<vmem>>, vector<1x128xf32>
    tpu.vector_store %arg12[%c21, %c0_39], %141 {strides = array<i32>} : memref<32x128xf32, #tpu.memory_space<vmem>>, vector<1x128xf32>,
    %143 = arith.mulf %133, %48 : vector<8x128xf32>
    %cst_40 = arith.constant dense<0.000000e+00> : vector<128xf32>
    %144 = vector.multi_reduction <add>, %143, %cst_40 [0] : vector<8x128xf32> to vector<128xf32>
    %145 = vector.shape_cast %144 : vector<128xf32> to vector<1x128xf32>
    %146 = arith.mulf %145, %137 : vector<1x128xf32>
    %c22 = arith.constant 22 : index
    %c0_41 = arith.constant 0 : index
    %147 = vector.load %arg12[%c22, %c0_41] : memref<32x128xf32, #tpu.memory_space<vmem>>, vector<1x128xf32>
    tpu.vector_store %arg12[%c22, %c0_41], %146 {strides = array<i32>} : memref<32x128xf32, #tpu.memory_space<vmem>>, vector<1x128xf32>,
    %148 = arith.mulf %133, %22 : vector<8x128xf32>
    %cst_42 = arith.constant dense<0.000000e+00> : vector<128xf32>
    %149 = vector.multi_reduction <add>, %148, %cst_42 [0] : vector<8x128xf32> to vector<128xf32>
    %150 = vector.shape_cast %149 : vector<128xf32> to vector<1x128xf32>
    %151 = arith.mulf %150, %137 : vector<1x128xf32>
    %c23 = arith.constant 23 : index
    %c0_43 = arith.constant 0 : index
    %152 = vector.load %arg12[%c23, %c0_43] : memref<32x128xf32, #tpu.memory_space<vmem>>, vector<1x128xf32>
    tpu.vector_store %arg12[%c23, %c0_43], %151 {strides = array<i32>} : memref<32x128xf32, #tpu.memory_space<vmem>>, vector<1x128xf32>,
    %153 = arith.mulf %133, %27 : vector<8x128xf32>
    %cst_44 = arith.constant dense<0.000000e+00> : vector<128xf32>
    %154 = vector.multi_reduction <add>, %153, %cst_44 [0] : vector<8x128xf32> to vector<128xf32>
    %155 = vector.shape_cast %154 : vector<128xf32> to vector<1x128xf32>
    %156 = arith.mulf %155, %137 : vector<1x128xf32>
    %c24 = arith.constant 24 : index
    %c0_45 = arith.constant 0 : index
    %157 = vector.load %arg12[%c24, %c0_45] : memref<32x128xf32, #tpu.memory_space<vmem>>, vector<1x128xf32>
    tpu.vector_store %arg12[%c24, %c0_45], %156 {strides = array<i32>} : memref<32x128xf32, #tpu.memory_space<vmem>>, vector<1x128xf32>,
    %158 = arith.mulf %133, %46 : vector<8x128xf32>
    %cst_46 = arith.constant dense<0.000000e+00> : vector<128xf32>
    %159 = vector.multi_reduction <add>, %158, %cst_46 [0] : vector<8x128xf32> to vector<128xf32>
    %160 = vector.shape_cast %159 : vector<128xf32> to vector<1x128xf32>
    %161 = arith.mulf %160, %137 : vector<1x128xf32>
    %c25 = arith.constant 25 : index
    %c0_47 = arith.constant 0 : index
    %162 = vector.load %arg12[%c25, %c0_47] : memref<32x128xf32, #tpu.memory_space<vmem>>, vector<1x128xf32>
    tpu.vector_store %arg12[%c25, %c0_47], %161 {strides = array<i32>} : memref<32x128xf32, #tpu.memory_space<vmem>>, vector<1x128xf32>,
    %163 = vector.extract_strided_slice %50 {offsets = [10, 0], sizes = [1, 128], strides = [1, 1]} : vector<15x128xf32> to vector<1x128xf32>
    %164 = vector.broadcast %163 : vector<1x128xf32> to vector<8x128xf32>
    %165 = arith.mulf %47, %164 : vector<8x128xf32>
    %166 = vector.extract_strided_slice %50 {offsets = [11, 0], sizes = [1, 128], strides = [1, 1]} : vector<15x128xf32> to vector<1x128xf32>
    %167 = vector.broadcast %166 : vector<1x128xf32> to vector<8x128xf32>
    %168 = arith.mulf %48, %167 : vector<8x128xf32>
    %169 = arith.addf %165, %168 : vector<8x128xf32>
    %170 = vector.extract_strided_slice %50 {offsets = [12, 0], sizes = [1, 128], strides = [1, 1]} : vector<15x128xf32> to vector<1x128xf32>
    %171 = vector.broadcast %170 : vector<1x128xf32> to vector<8x128xf32>
    %172 = arith.mulf %22, %171 : vector<8x128xf32>
    %173 = arith.addf %169, %172 : vector<8x128xf32>
    %174 = vector.extract_strided_slice %50 {offsets = [13, 0], sizes = [1, 128], strides = [1, 1]} : vector<15x128xf32> to vector<1x128xf32>
    %175 = vector.broadcast %174 : vector<1x128xf32> to vector<8x128xf32>
    %176 = arith.mulf %27, %175 : vector<8x128xf32>
    %177 = arith.addf %173, %176 : vector<8x128xf32>
    %178 = vector.extract_strided_slice %50 {offsets = [14, 0], sizes = [1, 128], strides = [1, 1]} : vector<15x128xf32> to vector<1x128xf32>
    %179 = vector.broadcast %178 : vector<1x128xf32> to vector<8x128xf32>
    %180 = arith.mulf %46, %179 : vector<8x128xf32>
    %181 = arith.addf %177, %180 : vector<8x128xf32>
    %cst_48 = arith.constant 0.44721359 : f32
    %182 = vector.broadcast %cst_48 : f32 to vector<8x128xf32>
    %183 = arith.mulf %181, %182 : vector<8x128xf32>
    %184 = arith.addf %183, %4 : vector<8x128xf32>
    %cst_49 = arith.constant dense<0xFF800000> : vector<128xf32>
    %185 = vector.multi_reduction <maximumf>, %184, %cst_49 [0] : vector<8x128xf32> to vector<128xf32>
    %186 = vector.shape_cast %185 : vector<128xf32> to vector<1x128xf32>
    %187 = vector.broadcast %186 : vector<1x128xf32> to vector<8x128xf32>
    %188 = arith.subf %184, %187 : vector<8x128xf32>
    %189 = math.exp %188 : vector<8x128xf32>
    %cst_50 = arith.constant dense<0.000000e+00> : vector<128xf32>
    %190 = vector.multi_reduction <add>, %189, %cst_50 [0] : vector<8x128xf32> to vector<128xf32>
    %191 = vector.shape_cast %190 : vector<128xf32> to vector<1x128xf32>
    %cst_51 = arith.constant 1.000000e+00 : f32
    %192 = vector.broadcast %cst_51 : f32 to vector<1x128xf32>
    %193 = arith.divf %192, %191 : vector<1x128xf32>
    %194 = arith.mulf %189, %47 : vector<8x128xf32>
    %cst_52 = arith.constant dense<0.000000e+00> : vector<128xf32>
    %195 = vector.multi_reduction <add>, %194, %cst_52 [0] : vector<8x128xf32> to vector<128xf32>
    %196 = vector.shape_cast %195 : vector<128xf32> to vector<1x128xf32>
    %197 = arith.mulf %196, %193 : vector<1x128xf32>
    %c26 = arith.constant 26 : index
    %c0_53 = arith.constant 0 : index
    %198 = vector.load %arg12[%c26, %c0_53] : memref<32x128xf32, #tpu.memory_space<vmem>>, vector<1x128xf32>
    tpu.vector_store %arg12[%c26, %c0_53], %197 {strides = array<i32>} : memref<32x128xf32, #tpu.memory_space<vmem>>, vector<1x128xf32>,
    %199 = arith.mulf %189, %48 : vector<8x128xf32>
    %cst_54 = arith.constant dense<0.000000e+00> : vector<128xf32>
    %200 = vector.multi_reduction <add>, %199, %cst_54 [0] : vector<8x128xf32> to vector<128xf32>
    %201 = vector.shape_cast %200 : vector<128xf32> to vector<1x128xf32>
    %202 = arith.mulf %201, %193 : vector<1x128xf32>
    %c27 = arith.constant 27 : index
    %c0_55 = arith.constant 0 : index
    %203 = vector.load %arg12[%c27, %c0_55] : memref<32x128xf32, #tpu.memory_space<vmem>>, vector<1x128xf32>
    tpu.vector_store %arg12[%c27, %c0_55], %202 {strides = array<i32>} : memref<32x128xf32, #tpu.memory_space<vmem>>, vector<1x128xf32>,
    %204 = arith.mulf %189, %22 : vector<8x128xf32>
    %cst_56 = arith.constant dense<0.000000e+00> : vector<128xf32>
    %205 = vector.multi_reduction <add>, %204, %cst_56 [0] : vector<8x128xf32> to vector<128xf32>
    %206 = vector.shape_cast %205 : vector<128xf32> to vector<1x128xf32>
    %207 = arith.mulf %206, %193 : vector<1x128xf32>
    %c28 = arith.constant 28 : index
    %c0_57 = arith.constant 0 : index
    %208 = vector.load %arg12[%c28, %c0_57] : memref<32x128xf32, #tpu.memory_space<vmem>>, vector<1x128xf32>
    tpu.vector_store %arg12[%c28, %c0_57], %207 {strides = array<i32>} : memref<32x128xf32, #tpu.memory_space<vmem>>, vector<1x128xf32>,
    %209 = arith.mulf %189, %27 : vector<8x128xf32>
    %cst_58 = arith.constant dense<0.000000e+00> : vector<128xf32>
    %210 = vector.multi_reduction <add>, %209, %cst_58 [0] : vector<8x128xf32> to vector<128xf32>
    %211 = vector.shape_cast %210 : vector<128xf32> to vector<1x128xf32>
    %212 = arith.mulf %211, %193 : vector<1x128xf32>
    %c29 = arith.constant 29 : index
    %c0_59 = arith.constant 0 : index
    %213 = vector.load %arg12[%c29, %c0_59] : memref<32x128xf32, #tpu.memory_space<vmem>>, vector<1x128xf32>
    tpu.vector_store %arg12[%c29, %c0_59], %212 {strides = array<i32>} : memref<32x128xf32, #tpu.memory_space<vmem>>, vector<1x128xf32>,
    %214 = arith.mulf %189, %46 : vector<8x128xf32>
    %cst_60 = arith.constant dense<0.000000e+00> : vector<128xf32>
    %215 = vector.multi_reduction <add>, %214, %cst_60 [0] : vector<8x128xf32> to vector<128xf32>
    %216 = vector.shape_cast %215 : vector<128xf32> to vector<1x128xf32>
    %217 = arith.mulf %216, %193 : vector<1x128xf32>
    %c30 = arith.constant 30 : index
    %c0_61 = arith.constant 0 : index
    %218 = vector.load %arg12[%c30, %c0_61] : memref<32x128xf32, #tpu.memory_space<vmem>>, vector<1x128xf32>
    tpu.vector_store %arg12[%c30, %c0_61], %217 {strides = array<i32>} : memref<32x128xf32, #tpu.memory_space<vmem>>, vector<1x128xf32>,
    %c0_62 = arith.constant 0 : index
    %c0_63 = arith.constant 0 : index
    %219 = vector.load %arg6[%c0_62, %c0_63] : memref<256x32xf32, #tpu.memory_space<vmem>>, vector<256x32xf32>
    %c0_64 = arith.constant 0 : index
    %c0_65 = arith.constant 0 : index
    %220 = vector.load %arg12[%c0_64, %c0_65] : memref<32x128xf32, #tpu.memory_space<vmem>>, vector<32x128xf32>
    %cst_66 = arith.constant dense<0.000000e+00> : vector<256x128xf32>
    %221 = tpu.matmul %219, %220, %cst_66 {dimension_numbers = #tpu.dot_dimension_numbers<[1], [0], [0], [1], [0, 0, 1, 1], [], []>} : vector<256x32xf32>, vector<32x128xf32>, vector<256x128xf32> -> vector<256x128xf32>
    %cst_67 = arith.constant 0.000000e+00 : f32
    %222 = vector.broadcast %cst_67 : f32 to vector<256x128xf32>
    %223 = arith.maximumf %221, %222 : vector<256x128xf32>
    %c0_68 = arith.constant 0 : index
    %c0_69 = arith.constant 0 : index
    %224 = vector.load %arg7[%c0_68, %c0_69] : memref<256x256xf32, #tpu.memory_space<vmem>>, vector<256x256xf32>
    %cst_70 = arith.constant dense<0.000000e+00> : vector<256x128xf32>
    %225 = tpu.matmul %224, %223, %cst_70 {dimension_numbers = #tpu.dot_dimension_numbers<[1], [0], [0], [1], [0, 0, 1, 1], [], []>} : vector<256x256xf32>, vector<256x128xf32>, vector<256x128xf32> -> vector<256x128xf32>
    %c0_71 = arith.constant 0 : index
    %c0_72 = arith.constant 0 : index
    %226 = vector.load %arg8[%c0_71, %c0_72] : memref<256x1xf32, #tpu.memory_space<vmem>>, vector<256x1xf32>
    %227 = vector.broadcast %226 : vector<256x1xf32> to vector<256x128xf32>
    %228 = arith.addf %225, %227 : vector<256x128xf32>
    %cst_73 = arith.constant 0.000000e+00 : f32
    %229 = vector.broadcast %cst_73 : f32 to vector<256x128xf32>
    %230 = arith.maximumf %228, %229 : vector<256x128xf32>
    %c0_74 = arith.constant 0 : index
    %c0_75 = arith.constant 0 : index
    %231 = vector.load %arg9[%c0_74, %c0_75] : memref<4x256xf32, #tpu.memory_space<vmem>>, vector<4x256xf32>
    %cst_76 = arith.constant dense<0.000000e+00> : vector<4x128xf32>
    %232 = tpu.matmul %231, %230, %cst_76 {dimension_numbers = #tpu.dot_dimension_numbers<[1], [0], [0], [1], [0, 0, 1, 1], [], []>} : vector<4x256xf32>, vector<256x128xf32>, vector<4x128xf32> -> vector<4x128xf32>
    %c0_77 = arith.constant 0 : index
    %c0_78 = arith.constant 0 : index
    %233 = vector.load %arg10[%c0_77, %c0_78] : memref<4x1xf32, #tpu.memory_space<vmem>>, vector<4x1xf32>
    %234 = vector.broadcast %233 : vector<4x1xf32> to vector<4x128xf32>
    %235 = arith.addf %232, %234 : vector<4x128xf32>
    %236 = vector.extract_strided_slice %235 {offsets = [0, 0], sizes = [2, 128], strides = [1, 1]} : vector<4x128xf32> to vector<2x128xf32>
    %237 = math.tanh %236 : vector<2x128xf32>
    %238 = vector.extract_strided_slice %235 {offsets = [2, 0], sizes = [2, 128], strides = [1, 1]} : vector<4x128xf32> to vector<2x128xf32>
    %239 = math.tanh %238 : vector<2x128xf32>
    %cst_79 = arith.constant 1.000000e+00 : f32
    %240 = vector.broadcast %cst_79 : f32 to vector<2x128xf32>
    %241 = arith.addf %239, %240 : vector<2x128xf32>
    %cst_80 = arith.constant 1.100000e+01 : f32
    %242 = vector.broadcast %cst_80 : f32 to vector<2x128xf32>
    %243 = arith.mulf %242, %241 : vector<2x128xf32>
    %cst_81 = arith.constant -2.000000e+01 : f32
    %244 = vector.broadcast %cst_81 : f32 to vector<2x128xf32>
    %245 = arith.addf %244, %243 : vector<2x128xf32>
    %246 = math.exp %245 : vector<2x128xf32>
    %c0_82 = arith.constant 0 : index
    %c0_83 = arith.constant 0 : index
    %c0_84 = arith.constant 0 : index
    %247 = vector.load %arg3[%c0_82, %c0_83, %c0_84] : memref<1x2x128xf32, #tpu.memory_space<vmem>>, vector<1x2x128xf32>
    %248 = vector.shape_cast %247 : vector<1x2x128xf32> to vector<2x128xf32>
    %249 = arith.mulf %246, %248 : vector<2x128xf32>
    %250 = arith.addf %237, %249 : vector<2x128xf32>
    %251 = math.tanh %250 : vector<2x128xf32>
    %cst_85 = arith.constant -5.000000e-01 : f32
    %252 = vector.broadcast %cst_85 : f32 to vector<2x128xf32>
    %253 = arith.mulf %252, %248 : vector<2x128xf32>
    %254 = arith.mulf %253, %248 : vector<2x128xf32>
    %255 = arith.subf %254, %245 : vector<2x128xf32>
    %cst_86 = arith.constant 0.918938517 : f32
    %256 = vector.broadcast %cst_86 : f32 to vector<2x128xf32>
    %257 = arith.subf %255, %256 : vector<2x128xf32>
    %258 = arith.mulf %251, %251 : vector<2x128xf32>
    %cst_87 = arith.constant 1.000000e+00 : f32
    %259 = vector.broadcast %cst_87 : f32 to vector<2x128xf32>
    %260 = arith.subf %259, %258 : vector<2x128xf32>
    %cst_88 = arith.constant 1.000000e-07 : f32
    %261 = vector.broadcast %cst_88 : f32 to vector<2x128xf32>
    %262 = arith.addf %260, %261 : vector<2x128xf32>
    %263 = math.log %262 : vector<2x128xf32>
    %264 = arith.subf %257, %263 : vector<2x128xf32>
    %cst_89 = arith.constant dense<0.000000e+00> : vector<128xf32>
    %265 = vector.multi_reduction <add>, %264, %cst_89 [0] : vector<2x128xf32> to vector<128xf32>
    %266 = vector.shape_cast %265 : vector<128xf32> to vector<1x128xf32>
    %267 = tpu.concatenate %251, %266 in 0 : vector<2x128xf32>, vector<1x128xf32> -> vector<3x128xf32>
    %c0_90 = arith.constant 0 : index
    %c0_91 = arith.constant 0 : index
    %c0_92 = arith.constant 0 : index
    %268 = vector.load %arg11[%c0_90, %c0_91, %c0_92] : memref<1x3x128xf32, #tpu.memory_space<vmem>>, vector<1x3x128xf32>
    %269 = vector.shape_cast %268 : vector<1x3x128xf32> to vector<3x128xf32>
    %270 = vector.shape_cast %267 : vector<3x128xf32> to vector<1x3x128xf32>
    tpu.vector_store %arg11[%c0_90, %c0_91, %c0_92], %270 {strides = array<i32>} : memref<1x3x128xf32, #tpu.memory_space<vmem>>, vector<1x3x128xf32>,
    return
  }
  func.func @transform_0(%arg0: i32) -> (i32, i32, i32) {
    %c0_i32 = arith.constant 0 : i32
    %c0_i32_0 = arith.constant 0 : i32
    %c0_i32_1 = arith.constant 0 : i32
    return %arg0, %c0_i32, %c0_i32_0 : i32, i32, i32
  }
  func.func @transform_1(%arg0: i32) -> (i32, i32, i32, i32) {
    %c0_i32 = arith.constant 0 : i32
    %c0_i32_0 = arith.constant 0 : i32
    %c0_i32_1 = arith.constant 0 : i32
    %c0_i32_2 = arith.constant 0 : i32
    return %arg0, %c0_i32, %c0_i32_0, %c0_i32_1 : i32, i32, i32, i32
  }
  func.func @transform_2(%arg0: i32) -> (i32, i32, i32) {
    %c0_i32 = arith.constant 0 : i32
    %c0_i32_0 = arith.constant 0 : i32
    %c0_i32_1 = arith.constant 0 : i32
    return %arg0, %c0_i32, %c0_i32_0 : i32, i32, i32
  }
  func.func @transform_3(%arg0: i32) -> (i32, i32) {
    %c0_i32 = arith.constant 0 : i32
    %c0_i32_0 = arith.constant 0 : i32
    %c0_i32_1 = arith.constant 0 : i32
    return %c0_i32, %c0_i32_0 : i32, i32
  }
  func.func @transform_4(%arg0: i32) -> (i32, i32) {
    %c0_i32 = arith.constant 0 : i32
    %c0_i32_0 = arith.constant 0 : i32
    %c0_i32_1 = arith.constant 0 : i32
    return %c0_i32, %c0_i32_0 : i32, i32
  }
  func.func @transform_5(%arg0: i32) -> (i32, i32) {
    %c0_i32 = arith.constant 0 : i32
    %c0_i32_0 = arith.constant 0 : i32
    %c0_i32_1 = arith.constant 0 : i32
    return %c0_i32, %c0_i32_0 : i32, i32
  }
  func.func @transform_6(%arg0: i32) -> (i32, i32) {
    %c0_i32 = arith.constant 0 : i32
    %c0_i32_0 = arith.constant 0 : i32
    %c0_i32_1 = arith.constant 0 : i32
    return %c0_i32, %c0_i32_0 : i32, i32
  }
  func.func @transform_7(%arg0: i32) -> (i32, i32) {
    %c0_i32 = arith.constant 0 : i32
    %c0_i32_0 = arith.constant 0 : i32
    %c0_i32_1 = arith.constant 0 : i32
    return %c0_i32, %c0_i32_0 : i32, i32
  }
  func.func @transform_8(%arg0: i32) -> (i32, i32) {
    %c0_i32 = arith.constant 0 : i32
    %c0_i32_0 = arith.constant 0 : i32
    %c0_i32_1 = arith.constant 0 : i32
    return %c0_i32, %c0_i32_0 : i32, i32
  }
  func.func @transform_9(%arg0: i32) -> (i32, i32) {
    %c0_i32 = arith.constant 0 : i32
    %c0_i32_0 = arith.constant 0 : i32
    %c0_i32_1 = arith.constant 0 : i32
    return %c0_i32, %c0_i32_0 : i32, i32
  }
  func.func @transform_10(%arg0: i32) -> (i32, i32, i32) {
    %c0_i32 = arith.constant 0 : i32
    %c0_i32_0 = arith.constant 0 : i32
    %c0_i32_1 = arith.constant 0 : i32
    return %arg0, %c0_i32, %c0_i32_0 : i32, i32, i32
  }
}

</mosaic_0001>

<llo_original>
// kernel: actor_forward.1
$region0: #{actor_forward.1}
  #allocation0 [shape = 'u32[]', space=smem, size = 0x4, offset = 0x4, fixed_abs, tag = 'smem constant byte address 0x4 - core index']
  #allocation1 [shape = 'u32[144,128]{1,0:T(1,128)}', space=vmem, size = 0x12000, scoped, tag = 'internal scratch']
  #allocation2 [shape = 'f32[32,128]{1,0:T(8,128)}', space=vmem, size = 0x4000, scoped, tag = 'scratch operand']
  %s0 = inlined_call_operand.vmem [shape: f32[2,16,128], index: 0, kind: input, shape index: {}]
  %s1 = inlined_call_operand.vmem [shape: f32[2,4,8,128], index: 1, kind: input, shape index: {}]
  %s2 = inlined_call_operand.vmem [shape: f32[2,2,128], index: 2, kind: input, shape index: {}]
  %s3 = inlined_call_operand.vmem [shape: f32[8,128], index: 3, kind: input, shape index: {}]
  %s4 = inlined_call_operand.vmem [shape: f32[15,16], index: 4, kind: input, shape index: {}]
  %s5 = inlined_call_operand.vmem [shape: f32[256,32], index: 5, kind: input, shape index: {}]
  %s6 = inlined_call_operand.vmem [shape: f32[256,256], index: 6, kind: input, shape index: {}]
  %s7 = inlined_call_operand.vmem [shape: f32[256,1], index: 7, kind: input, shape index: {}]
  %s8 = inlined_call_operand.vmem [shape: f32[4,256], index: 8, kind: input, shape index: {}]
  %s9 = inlined_call_operand.vmem [shape: f32[4,1], index: 9, kind: input, shape index: {}]
  %s10 = inlined_call_operand.vmem [shape: f32[2,3,128], index: 10, kind: output, shape index: {}]
  %s11 = sld [smem:[#allocation0]]
  $region73: #{actor_forward.1} parent=0
    _
  %s13 = ssub.s32 1, %s11
  %s14 = scalar_select 0, %s13, %s11
  loop: start=0, step=1, limit=4
  $region2: #{actor_forward.1} parent=0 // loop_pre_header
    _
  $region3: #{actor_forward.1} parent=0 // loop_header
    %s16 = sphi 0, %s20
    %p17 = scmp.ge.s32.totalorder %s16, 4
    %s26 = sphi 0, %s28
    %s29 = sphi 0, %s26
    %s30 = sphi 0, %s29
    %s46 = sphi 0, %s30
    %s52 = sphi 0, %s54
    %s55 = sphi 0, %s52
    %s56 = sphi 0, %s55
    %s72 = sphi 0, %s56
    %s78 = sphi 0, %s80
    %s81 = sphi 0, %s78
    %s82 = sphi 0, %s81
    %s98 = sphi 0, %s82
    %s102 = sphi 0, %s102
    %s104 = sphi 0, %s102
    %s105 = sphi 0, %s104
    %s119 = sphi 0, %s105
    %s123 = sphi 0, %s123
    %s125 = sphi 0, %s123
    %s126 = sphi 0, %s125
    %s140 = sphi 0, %s126
    %s144 = sphi 0, %s144
    %s146 = sphi 0, %s144
    %s147 = sphi 0, %s146
    %s161 = sphi 0, %s147
    %s165 = sphi 0, %s165
    %s167 = sphi 0, %s165
    %s168 = sphi 0, %s167
    %s182 = sphi 0, %s168
    %s186 = sphi 0, %s186
    %s188 = sphi 0, %s186
    %s189 = sphi 0, %s188
    %s203 = sphi 0, %s189
    %s207 = sphi 0, %s207
    %s209 = sphi 0, %s207
    %s210 = sphi 0, %s209
    %s224 = sphi 0, %s210
    %s228 = sphi 0, %s228
    %s230 = sphi 0, %s228
    %s231 = sphi 0, %s230
    %s245 = sphi 0, %s231
    %s251 = sphi 0, %s253
    %s254 = sphi 0, %s251
    %s255 = sphi 0, %s254
    %s271 = sphi 0, %s255
  $region4: #{actor_forward.1} parent=0 // loop_header_branch
    %19 = sbr.rel (%p17) target = $region8
  $region5: #{actor_forward.1} parent=0 // loop_body
    %s21 = ssub.s32 %s16, 1
    %s22 = ssub.s32 %s16, 2
    %s23 = sadd.s32 %s16, 1
    %s24 = ssub.s32 %s16, %s23
    %p25 = scmp.eq.s32.totalorder %s24, 0
    %s27 = sadd.s32 %s26, 1
    %s28 = scalar_select %p25, %s26, %s27
    %p31 = pneg %p25
    %p32 = scmp.eq.s32.totalorder %s16, 1
    %p33 = por %p31, %p32
    %p34 = scmp.ne.s32.totalorder %s26, %s29
    %p35 = scmp.eq.s32.totalorder %s16, 0
    %p36 = por %p34, %p35
    %p37 = scmp.ne.s32.totalorder %s26, %s29
    %p38 = scmp.eq.s32.totalorder %s21, 1
    %p39 = por %p37, %p38
    %p40 = scmp.ne.s32.totalorder %s29, %s30
    %p41 = scmp.eq.s32.totalorder %s21, 0
    %p42 = por %p40, %p41
    %p43 = scmp.ne.s32.totalorder %s29, %s30
    %p44 = scmp.eq.s32.totalorder %s22, 1
    %p45 = por %p43, %p44
    %p47 = scmp.ne.s32.totalorder %s30, %s46
    %p48 = scmp.eq.s32.totalorder %s22, 0
    %p49 = por %p47, %p48
    %s50 = ssub.s32 %s16, %s23
    %p51 = scmp.eq.s32.totalorder %s50, 0
    %s53 = sadd.s32 %s52, 1
    %s54 = scalar_select %p51, %s52, %s53
    %p57 = pneg %p51
    %p58 = scmp.eq.s32.totalorder %s16, 1
    %p59 = por %p57, %p58
    %p60 = scmp.ne.s32.totalorder %s52, %s55
    %p61 = scmp.eq.s32.totalorder %s16, 0
    %p62 = por %p60, %p61
    %p63 = scmp.ne.s32.totalorder %s52, %s55
    %p64 = scmp.eq.s32.totalorder %s21, 1
    %p65 = por %p63, %p64
    %p66 = scmp.ne.s32.totalorder %s55, %s56
    %p67 = scmp.eq.s32.totalorder %s21, 0
    %p68 = por %p66, %p67
    %p69 = scmp.ne.s32.totalorder %s55, %s56
    %p70 = scmp.eq.s32.totalorder %s22, 1
    %p71 = por %p69, %p70
    %p73 = scmp.ne.s32.totalorder %s56, %s72
    %p74 = scmp.eq.s32.totalorder %s22, 0
    %p75 = por %p73, %p74
    %s76 = ssub.s32 %s16, %s23
    %p77 = scmp.eq.s32.totalorder %s76, 0
    %s79 = sadd.s32 %s78, 1
    %s80 = scalar_select %p77, %s78, %s79
    %p83 = pneg %p77
    %p84 = scmp.eq.s32.totalorder %s16, 1
    %p85 = por %p83, %p84
    %p86 = scmp.ne.s32.totalorder %s78, %s81
    %p87 = scmp.eq.s32.totalorder %s16, 0
    %p88 = por %p86, %p87
    %p89 = scmp.ne.s32.totalorder %s78, %s81
    %p90 = scmp.eq.s32.totalorder %s21, 1
    %p91 = por %p89, %p90
    %p92 = scmp.ne.s32.totalorder %s81, %s82
    %p93 = scmp.eq.s32.totalorder %s21, 0
    %p94 = por %p92, %p93
    %p95 = scmp.ne.s32.totalorder %s81, %s82
    %p96 = scmp.eq.s32.totalorder %s22, 1
    %p97 = por %p95, %p96
    %p99 = scmp.ne.s32.totalorder %s82, %s98
    %p100 = scmp.eq.s32.totalorder %s22, 0
    %p101 = por %p99, %p100
    %s103 = sadd.s32 %s102, 1
    %p106 = scmp.eq.s32.totalorder %s16, 1
    %p107 = scmp.ne.s32.totalorder %s102, %s104
    %p108 = scmp.eq.s32.totalorder %s16, 0
    %p109 = por %p107, %p108
    %p110 = scmp.ne.s32.totalorder %s102, %s104
    %p111 = scmp.eq.s32.totalorder %s21, 1
    %p112 = por %p110, %p111
    %p113 = scmp.ne.s32.totalorder %s104, %s105
    %p114 = scmp.eq.s32.totalorder %s21, 0
    %p115 = por %p113, %p114
    %p116 = scmp.ne.s32.totalorder %s104, %s105
    %p117 = scmp.eq.s32.totalorder %s22, 1
    %p118 = por %p116, %p117
    %p120 = scmp.ne.s32.totalorder %s105, %s119
    %p121 = scmp.eq.s32.totalorder %s22, 0
    %p122 = por %p120, %p121
    %s124 = sadd.s32 %s123, 1
    %p127 = scmp.eq.s32.totalorder %s16, 1
    %p128 = scmp.ne.s32.totalorder %s123, %s125
    %p129 = scmp.eq.s32.totalorder %s16, 0
    %p130 = por %p128, %p129
    %p131 = scmp.ne.s32.totalorder %s123, %s125
    %p132 = scmp.eq.s32.totalorder %s21, 1
    %p133 = por %p131, %p132
    %p134 = scmp.ne.s32.totalorder %s125, %s126
    %p135 = scmp.eq.s32.totalorder %s21, 0
    %p136 = por %p134, %p135
    %p137 = scmp.ne.s32.totalorder %s125, %s126
    %p138 = scmp.eq.s32.totalorder %s22, 1
    %p139 = por %p137, %p138
    %p141 = scmp.ne.s32.totalorder %s126, %s140
    %p142 = scmp.eq.s32.totalorder %s22, 0
    %p143 = por %p141, %p142
    %s145 = sadd.s32 %s144, 1
    %p148 = scmp.eq.s32.totalorder %s16, 1
    %p149 = scmp.ne.s32.totalorder %s144, %s146
    %p150 = scmp.eq.s32.totalorder %s16, 0
    %p151 = por %p149, %p150
    %p152 = scmp.ne.s32.totalorder %s144, %s146
    %p153 = scmp.eq.s32.totalorder %s21, 1
    %p154 = por %p152, %p153
    %p155 = scmp.ne.s32.totalorder %s146, %s147
    %p156 = scmp.eq.s32.totalorder %s21, 0
    %p157 = por %p155, %p156
    %p158 = scmp.ne.s32.totalorder %s146, %s147
    %p159 = scmp.eq.s32.totalorder %s22, 1
    %p160 = por %p158, %p159
    %p162 = scmp.ne.s32.totalorder %s147, %s161
    %p163 = scmp.eq.s32.totalorder %s22, 0
    %p164 = por %p162, %p163
    %s166 = sadd.s32 %s165, 1
    %p169 = scmp.eq.s32.totalorder %s16, 1
    %p170 = scmp.ne.s32.totalorder %s165, %s167
    %p171 = scmp.eq.s32.totalorder %s16, 0
    %p172 = por %p170, %p171
    %p173 = scmp.ne.s32.totalorder %s165, %s167
    %p174 = scmp.eq.s32.totalorder %s21, 1
    %p175 = por %p173, %p174
    %p176 = scmp.ne.s32.totalorder %s167, %s168
    %p177 = scmp.eq.s32.totalorder %s21, 0
    %p178 = por %p176, %p177
    %p179 = scmp.ne.s32.totalorder %s167, %s168
    %p180 = scmp.eq.s32.totalorder %s22, 1
    %p181 = por %p179, %p180
    %p183 = scmp.ne.s32.totalorder %s168, %s182
    %p184 = scmp.eq.s32.totalorder %s22, 0
    %p185 = por %p183, %p184
    %s187 = sadd.s32 %s186, 1
    %p190 = scmp.eq.s32.totalorder %s16, 1
    %p191 = scmp.ne.s32.totalorder %s186, %s188
    %p192 = scmp.eq.s32.totalorder %s16, 0
    %p193 = por %p191, %p192
    %p194 = scmp.ne.s32.totalorder %s186, %s188
    %p195 = scmp.eq.s32.totalorder %s21, 1
    %p196 = por %p194, %p195
    %p197 = scmp.ne.s32.totalorder %s188, %s189
    %p198 = scmp.eq.s32.totalorder %s21, 0
    %p199 = por %p197, %p198
    %p200 = scmp.ne.s32.totalorder %s188, %s189
    %p201 = scmp.eq.s32.totalorder %s22, 1
    %p202 = por %p200, %p201
    %p204 = scmp.ne.s32.totalorder %s189, %s203
    %p205 = scmp.eq.s32.totalorder %s22, 0
    %p206 = por %p204, %p205
    %s208 = sadd.s32 %s207, 1
    %p211 = scmp.eq.s32.totalorder %s16, 1
    %p212 = scmp.ne.s32.totalorder %s207, %s209
    %p213 = scmp.eq.s32.totalorder %s16, 0
    %p214 = por %p212, %p213
    %p215 = scmp.ne.s32.totalorder %s207, %s209
    %p216 = scmp.eq.s32.totalorder %s21, 1
    %p217 = por %p215, %p216
    %p218 = scmp.ne.s32.totalorder %s209, %s210
    %p219 = scmp.eq.s32.totalorder %s21, 0
    %p220 = por %p218, %p219
    %p221 = scmp.ne.s32.totalorder %s209, %s210
    %p222 = scmp.eq.s32.totalorder %s22, 1
    %p223 = por %p221, %p222
    %p225 = scmp.ne.s32.totalorder %s210, %s224
    %p226 = scmp.eq.s32.totalorder %s22, 0
    %p227 = por %p225, %p226
    %s229 = sadd.s32 %s228, 1
    %p232 = scmp.eq.s32.totalorder %s16, 1
    %p233 = scmp.ne.s32.totalorder %s228, %s230
    %p234 = scmp.eq.s32.totalorder %s16, 0
    %p235 = por %p233, %p234
    %p236 = scmp.ne.s32.totalorder %s228, %s230
    %p237 = scmp.eq.s32.totalorder %s21, 1
    %p238 = por %p236, %p237
    %p239 = scmp.ne.s32.totalorder %s230, %s231
    %p240 = scmp.eq.s32.totalorder %s21, 0
    %p241 = por %p239, %p240
    %p242 = scmp.ne.s32.totalorder %s230, %s231
    %p243 = scmp.eq.s32.totalorder %s22, 1
    %p244 = por %p242, %p243
    %p246 = scmp.ne.s32.totalorder %s231, %s245
    %p247 = scmp.eq.s32.totalorder %s22, 0
    %p248 = por %p246, %p247
    %s249 = ssub.s32 %s16, %s23
    %p250 = scmp.eq.s32.totalorder %s249, 0
    %s252 = sadd.s32 %s251, 1
    %s253 = scalar_select %p250, %s251, %s252
    %p256 = pneg %p250
    %p257 = scmp.eq.s32.totalorder %s16, 1
    %p258 = por %p256, %p257
    %p259 = scmp.ne.s32.totalorder %s251, %s254
    %p260 = scmp.eq.s32.totalorder %s16, 0
    %p261 = por %p259, %p260
    %p262 = scmp.ne.s32.totalorder %s251, %s254
    %p263 = scmp.eq.s32.totalorder %s21, 1
    %p264 = por %p262, %p263
    %p265 = scmp.ne.s32.totalorder %s254, %s255
    %p266 = scmp.eq.s32.totalorder %s21, 0
    %p267 = por %p265, %p266
    %p268 = scmp.ne.s32.totalorder %s254, %s255
    %p269 = scmp.eq.s32.totalorder %s22, 1
    %p270 = por %p268, %p269
    %p272 = scmp.ne.s32.totalorder %s255, %s271
    %p273 = scmp.eq.s32.totalorder %s22, 0
    %p274 = por %p272, %p273
    %p275 = scmp.le.s32.totalorder 1, %s16
    %p276 = scmp.lt.s32.totalorder %s16, 3
    %p277 = pnand %p275, %p276
    %p278 = pneg %p277
    // Predicated region
    $region9: #{actor_forward.1} parent=5 // pred_check
      _
    $region10: #{actor_forward.1} parent=5 // pred_check_branch
      %280 = sbr.rel (%p277) target = $region12
    $region11: #{actor_forward.1} parent=5 // pred_region
      %s281 = ssub.s32 %s16, 1
      // Predicated region
      $region13: #{actor_forward.1} parent=11 // pred_check
        %p282 = pneg %p115
      $region14: #{actor_forward.1} parent=11 // pred_check_branch
        %284 = sbr.rel (%p282) target = $region16
      $region15: #{actor_forward.1} parent=11 // pred_region
        _
      $region16: #{actor_forward.1} parent=11 // pred_fallthru
        _
      // Predicated region
      $region17: #{actor_forward.1} parent=11 // pred_check
        %p285 = pneg %p136
      $region18: #{actor_forward.1} parent=11 // pred_check_branch
        %287 = sbr.rel (%p285) target = $region20
      $region19: #{actor_forward.1} parent=11 // pred_region
        _
      $region20: #{actor_forward.1} parent=11 // pred_fallthru
        _
      // Predicated region
      $region21: #{actor_forward.1} parent=11 // pred_check
        %p288 = pneg %p157
      $region22: #{actor_forward.1} parent=11 // pred_check_branch
        %290 = sbr.rel (%p288) target = $region24
      $region23: #{actor_forward.1} parent=11 // pred_region
        _
      $region24: #{actor_forward.1} parent=11 // pred_fallthru
        _
      // Predicated region
      $region25: #{actor_forward.1} parent=11 // pred_check
        %p291 = pneg %p178
      $region26: #{actor_forward.1} parent=11 // pred_check_branch
        %293 = sbr.rel (%p291) target = $region28
      $region27: #{actor_forward.1} parent=11 // pred_region
        _
      $region28: #{actor_forward.1} parent=11 // pred_fallthru
        _
      // Predicated region
      $region29: #{actor_forward.1} parent=11 // pred_check
        %p294 = pneg %p199
      $region30: #{actor_forward.1} parent=11 // pred_check_branch
        %296 = sbr.rel (%p294) target = $region32
      $region31: #{actor_forward.1} parent=11 // pred_region
        _
      $region32: #{actor_forward.1} parent=11 // pred_fallthru
        _
      // Predicated region
      $region33: #{actor_forward.1} parent=11 // pred_check
        %p297 = pneg %p220
      $region34: #{actor_forward.1} parent=11 // pred_check_branch
        %299 = sbr.rel (%p297) target = $region36
      $region35: #{actor_forward.1} parent=11 // pred_region
        _
      $region36: #{actor_forward.1} parent=11 // pred_fallthru
        _
      // Predicated region
      $region37: #{actor_forward.1} parent=11 // pred_check
        %p300 = pneg %p241
      $region38: #{actor_forward.1} parent=11 // pred_check_branch
        %302 = sbr.rel (%p300) target = $region40
      $region39: #{actor_forward.1} parent=11 // pred_region
        _
      $region40: #{actor_forward.1} parent=11 // pred_fallthru
        _
    $region12: #{actor_forward.1} parent=5 // pred_fallthru
      _
    %p303 = scmp.lt.s32.totalorder %s16, 2
    // Predicated region
    $region41: #{actor_forward.1} parent=5 // pred_check
      %p304 = pneg %p303
    $region42: #{actor_forward.1} parent=5 // pred_check_branch
      %306 = sbr.rel (%p304) target = $region44
    $region43: #{actor_forward.1} parent=5 // pred_region
      // Predicated region
      $region45: #{actor_forward.1} parent=43 // pred_check
        %p307 = pneg %p36
      $region46: #{actor_forward.1} parent=43 // pred_check_branch
        %309 = sbr.rel (%p307) target = $region48
      $region47: #{actor_forward.1} parent=43 // pred_region
        %p310 = scmp.lt.s32.totalorder %s16, 1
        %s311 = scalar_select %p310, %s16, 1
        %s312 = smul.addr %s311, 2
        %s313 = smul.addr %s312, 8
        %s314 = scalar_lea.vmem %s0, %s313
      $region48: #{actor_forward.1} parent=43 // pred_fallthru
        _
      // Predicated region
      $region49: #{actor_forward.1} parent=43 // pred_check
        %p315 = pneg %p62
      $region50: #{actor_forward.1} parent=43 // pred_check_branch
        %317 = sbr.rel (%p315) target = $region52
      $region51: #{actor_forward.1} parent=43 // pred_region
        %p318 = scmp.lt.s32.totalorder %s16, 1
        %s319 = scalar_select %p318, %s16, 1
        %s320 = smul.addr %s319, 4
        %s321 = smul.addr %s320, 8
        %s322 = scalar_lea.vmem %s1, %s321
      $region52: #{actor_forward.1} parent=43 // pred_fallthru
        _
      // Predicated region
      $region53: #{actor_forward.1} parent=43 // pred_check
        %p323 = pneg %p88
      $region54: #{actor_forward.1} parent=43 // pred_check_branch
        %325 = sbr.rel (%p323) target = $region56
      $region55: #{actor_forward.1} parent=43 // pred_region
        %p326 = scmp.lt.s32.totalorder %s16, 1
        %s327 = scalar_select %p326, %s16, 1
        %s328 = smul.addr %s327, 2
        %s329 = scalar_lea.vmem %s2, %s328
      $region56: #{actor_forward.1} parent=43 // pred_fallthru
        _
    $region44: #{actor_forward.1} parent=5 // pred_fallthru
      _
    %p330 = scmp.le.s32.totalorder 1, %s16
    %p331 = scmp.lt.s32.totalorder %s16, 3
    %p332 = pnand %p330, %p331
    %p333 = pneg %p332
    // Predicated region
    $region57: #{actor_forward.1} parent=5 // pred_check
      _
    $region58: #{actor_forward.1} parent=5 // pred_check_branch
      %335 = sbr.rel (%p332) target = $region60
    $region59: #{actor_forward.1} parent=5 // pred_region
      %s336 = ssub.s32 %s16, 1
      %p337 = scmp.lt.s32.totalorder %s21, 1
      %s338 = scalar_select %p337, %s21, 1
      %s339 = smul.addr %s338, 2
      %s340 = smul.addr %s339, 8
      %s341 = scalar_lea.vmem %s0, %s340
      %p342 = pneg %p42
      %p343 = pneg %p39
      %p344 = scmp.lt.s32.totalorder %s21, 1
      %s345 = scalar_select %p344, %s21, 1
      %s346 = smul.addr %s345, 4
      %s347 = smul.addr %s346, 8
      %s348 = scalar_lea.vmem %s1, %s347
      %p349 = pneg %p68
      %p350 = pneg %p65
      %p351 = scmp.lt.s32.totalorder %s21, 1
      %s352 = scalar_select %p351, %s21, 1
      %s353 = smul.addr %s352, 2
      %s354 = scalar_lea.vmem %s2, %s353
      %p355 = pneg %p94
      %p356 = pneg %p91
      %p357 = pneg %p115
      %p358 = pneg %p112
      %p359 = pneg %p136
      %p360 = pneg %p133
      %p361 = pneg %p157
      %p362 = pneg %p154
      %p363 = pneg %p178
      %p364 = pneg %p175
      %p365 = pneg %p199
      %p366 = pneg %p196
      %p367 = pneg %p220
      %p368 = pneg %p217
      %p369 = pneg %p241
      %p370 = pneg %p238
      %p371 = pneg %p267
      %p372 = pneg %p264
      %p373 = scmp.lt.s32.totalorder %s21, 1
      %s374 = scalar_select %p373, %s21, 1
      %s375 = smul.addr %s374, 4
      %s376 = scalar_lea.vmem %s10, %s375
      %p377 = scmp.lt.s32.totalorder %s21, 1
      %s378 = scalar_select %p377, %s21, 1
      %s379 = smul.addr %s378, 2
      %s380 = smul.addr %s379, 8
      %s381 = scalar_lea.vmem %s0, %s380
      %p382 = scmp.lt.s32.totalorder %s21, 1
      %s383 = scalar_select %p382, %s21, 1
      %s384 = smul.addr %s383, 4
      %s385 = smul.addr %s384, 8
      %s386 = scalar_lea.vmem %s1, %s385
      %p387 = scmp.lt.s32.totalorder %s21, 1
      %s388 = scalar_select %p387, %s21, 1
      %s389 = smul.addr %s388, 2
      %s390 = scalar_lea.vmem %s2, %s389
      %p391 = scmp.lt.s32.totalorder %s21, 1
      %s392 = scalar_select %p391, %s21, 1
      %s393 = smul.addr %s392, 4
      %s394 = scalar_lea.vmem %s10, %s393
      %v395 = vld [vmem:[%s381] sm:$0xff]
      %v396 = vld [vmem:[%s381 + $0x8] sm:$0xff]
      %v397 = vld [vmem:[%s386] sm:$0xff]
      %v398 = vld [vmem:[%s386 + $0x8] sm:$0xff]
      %v399 = vld [vmem:[%s386 + $0x10] sm:$0xff]
      %v400 = vld [vmem:[%s386 + $0x18] sm:$0xff]
      %v401 = vld [vmem:[%s3] sm:$0xff]
      %402 = vst [vmem:[#allocation2] sm:$0xff] %v395
      %403 = vst [vmem:[#allocation2 + $0x8] sm:$0xff] %v396
      %404 = vst [vmem:[#allocation2 + $0x1f] sm:$0x1] 0.0
      %v405 = vlaneseq
      %v406 = vshrl.u32 %v405, 7
      %v407 = vsub.s32 0, %v406
      %v408 = vrot.slane %v395, %v407
      %v409 = vsub.f32 %v397, %v408
      %v410 = vlaneseq
      %v411 = vshrl.u32 %v410, 7
      %v412 = vsub.s32 1, %v411
      %v413 = vrot.slane %v395, %v412
      %v414 = vsub.f32 %v398, %v413
      %v415 = vlaneseq
      %v416 = vshrl.u32 %v415, 7
      %v417 = vsub.s32 2, %v416
      %v418 = vrot.slane %v395, %v417
      %v419 = vsub.f32 %v399, %v418
      %v420 = vlaneseq
      %v421 = vshrl.u32 %v420, 7
      %v422 = vsub.s32 3, %v421
      %v423 = vrot.slane %v395, %v422
      %v424 = vsub.f32 %v400, %v423
      %vm425 = vcmp.lt.f32.partialorder %v401, -1.0
      %v426 = vmul.f32 %v409, %v409
      %v427 = vmul.f32 %v414, %v414
      %v428 = vadd.f32 %v426, %v427
      %v429 = vrsqrt.pop %v428
      %v430 = vmul.f32 %v428, %v429
      %vm431 = vcmp.eq.f32.partialorder %v428, inf
      %v432 = vsel %vm431, %v428, %v430
      %vm433 = vcmp.eq.f32.partialorder %v428, 0.0
      %v434 = vand.u32 %v428, 2147483648
      %v435 = vsel %vm433, %v434, %v432
      %v436 = vsel %vm425, 1.0, %v435
      %v437 = vrcp.pop %v436
      %v438 = vsub.f32 %v435, 0.2
      %v439 = vmul.f32 %v438, 5.0
      %v440 = vadd.f32 %v439, -1.0
      %v441 = vmul.f32 %v440, 1.442695
      %v442 = vpow.pop %v441
      %v443 = vadd.f32 %v442, 1.0
      %v444 = vrcp.pop %v443
      %v445 = vmul.f32 %v409, %v437
      %v446 = vmul.f32 %v414, %v437
      %v447 = vld [vmem:[%s4] sm:$0xff]
      %v448 = vld [vmem:[%s4 + $0x8] sm:$0x7f]
      %vm449 = vcmask 130048
      %v451 = vsel %vm449, %v447, 0
      %v454 = vsel %vm449, %v448, 0
      %456 = vmatprep.subr.mxu0 0.0
      %457 = vmatpush1.msra.mxu0 %v395
      %458 = vmatprep.subr.mxu0 0.0
      %459 = vmatpush1.msra.mxu0 %v396
      %460 = vmatprep.subr.mxu0 0.0
      %461 = vmatpush1.msra.mxu0 0.0
      %462 = vmatprep.subr.mxu0 0.0
      %463 = vmatpush1.msra.mxu0 0.0
      %464 = vmatprep.subr.mxu0 0.0
      %465 = vmatpush1.msra.mxu0 0.0
      %466 = vmatprep.subr.mxu0 0.0
      %467 = vmatpush1.msra.mxu0 0.0
      %468 = vmatprep.subr.mxu0 0.0
      %469 = vmatpush1.msra.mxu0 0.0
      %470 = vmatprep.subr.mxu0 0.0
      %471 = vmatpush1.msra.mxu0 0.0
      %472 = vmatprep.subr.mxu0 0.0
      %473 = vmatpush1.msra.mxu0 0.0
      %474 = vmatprep.subr.mxu0 0.0
      %475 = vmatpush1.msra.mxu0 0.0
      %476 = vmatprep.subr.mxu0 0.0
      %477 = vmatpush1.msra.mxu0 0.0
      %478 = vmatprep.subr.mxu0 0.0
      %479 = vmatpush1.msra.mxu0 0.0
      %480 = vmatprep.subr.mxu0 0.0
      %481 = vmatpush1.msra.mxu0 0.0
      %482 = vmatprep.subr.mxu0 0.0
      %483 = vmatpush1.msra.mxu0 0.0
      %484 = vmatprep.subr.mxu0 0.0
      %485 = vmatpush1.msra.mxu0 0.0
      %486 = vmatprep.subr.mxu0 0.0
      %487 = vmatpush1.msra.mxu0 0.0
      %488 = vmatprep.subr.mxu0 0.0
      %489 = vmatpush1.msra.mxu0 0.0
      %490 = vmatprep.subr.mxu0 0.0
      %491 = vmatpush1.msra.mxu0 0.0
      %492 = vmatprep.subr.mxu0 0.0
      %493 = vmatpush1.msra.mxu0 0.0
      %494 = vmatprep.subr.mxu0 0.0
      %495 = vmatpush1.msra.mxu0 0.0
      %496 = vmatprep.subr.mxu0 0.0
      %497 = vmatpush1.msra.mxu0 0.0
      %498 = vmatprep.subr.mxu0 0.0
      %499 = vmatpush1.msra.mxu0 0.0
      %500 = vmatprep.subr.mxu0 0.0
      %501 = vmatpush1.msra.mxu0 0.0
      %502 = vmatprep.subr.mxu0 0.0
      %503 = vmatpush1.msra.mxu0 0.0
      %504 = vmatprep.subr.mxu0 0.0
      %505 = vmatpush1.msra.mxu0 0.0
      %506 = vmatprep.subr.mxu0 0.0
      %507 = vmatpush1.msra.mxu0 0.0
      %508 = vmatprep.subr.mxu0 0.0
      %509 = vmatpush1.msra.mxu0 0.0
      %510 = vmatprep.subr.mxu0 0.0
      %511 = vmatpush1.msra.mxu0 0.0
      %512 = vmatprep.subr.mxu0 0.0
      %513 = vmatpush1.msra.mxu0 0.0
      %514 = vmatprep.subr.mxu0 0.0
      %515 = vmatpush1.msra.mxu0 0.0
      %516 = vmatprep.subr.mxu0 0.0
      %517 = vmatpush1.msra.mxu0 0.0
      %518 = vmatprep.subr.mxu0 0.0
      %519 = vmatpush1.msra.mxu0 0.0
      %520 = vmatprep.mubr.f32.mxu0 0.0
      %521 = vmatmul.mubr.f32.gmra.mrb[0].mxu0 %v451
      %v522 = vpop.f32.mrb[0].mxu0
      %v523 = vadd.f32 0.0, %v522
      %v524 = vpop.f32.mrb[0].mxu0
      %525 = vmatprep.mubr.f32.mxu0 0.0
      %526 = vmatmul.mubr.f32.gmra.mrb[0].mxu0 %v454
      %v527 = vpop.f32.mrb[0].mxu0
      %v528 = vadd.f32 0.0, %v527
      %v529 = vpop.f32.mrb[0].mxu0
      %530 = vdwg.mxu0
      %v531 = vlaneseq
      %v532 = vshrl.u32 %v531, 7
      %v533 = vsub.s32 0, %v532
      %v534 = vrot.slane %v523, %v533
      %v535 = vmul.f32 %v445, %v534
      %v536 = vlaneseq
      %v537 = vshrl.u32 %v536, 7
      %v538 = vsub.s32 1, %v537
      %v539 = vrot.slane %v523, %v538
      %v540 = vmul.f32 %v446, %v539
      %v541 = vadd.f32 %v535, %v540
      %v542 = vlaneseq
      %v543 = vshrl.u32 %v542, 7
      %v544 = vsub.s32 2, %v543
      %v545 = vrot.slane %v523, %v544
      %v546 = vmul.f32 %v419, %v545
      %v547 = vadd.f32 %v541, %v546
      %v548 = vlaneseq
      %v549 = vshrl.u32 %v548, 7
      %v550 = vsub.s32 3, %v549
      %v551 = vrot.slane %v523, %v550
      %v552 = vmul.f32 %v424, %v551
      %v553 = vadd.f32 %v547, %v552
      %v554 = vlaneseq
      %v555 = vshrl.u32 %v554, 7
      %v556 = vsub.s32 4, %v555
      %v557 = vrot.slane %v523, %v556
      %v558 = vmul.f32 %v444, %v557
      %v559 = vadd.f32 %v553, %v558
      %v560 = vmul.f32 %v559, 0.4472136
      %v561 = vadd.f32 %v560, %v401
      %v562 = vrot.slane %v561, 4
      %v563 = vmax.f32 %v561, %v562
      %v564 = vrot.slane %v563, 2
      %v565 = vmax.f32 %v563, %v564
      %v566 = vrot.slane %v565, 1
      %v567 = vmax.f32 %v565, %v566
      %v568 = vsub.f32 %v561, %v567
      %v569 = vmul.f32 %v568, 1.442695
      %v570 = vpow.pop %v569
      %v571 = vrot.slane %v570, 4
      %v572 = vadd.f32 %v570, %v571
      %v573 = vrot.slane %v572, 2
      %v574 = vadd.f32 %v572, %v573
      %v575 = vrot.slane %v574, 1
      %v576 = vadd.f32 %v574, %v575
      %v577 = vrcp.pop %v576
      %v578 = vmul.f32 1.0, %v577
      %v579 = vmul.f32 %v570, %v445
      %v580 = vrot.slane %v579, 4
      %v581 = vadd.f32 %v579, %v580
      %v582 = vrot.slane %v581, 2
      %v583 = vadd.f32 %v581, %v582
      %v584 = vrot.slane %v583, 1
      %v585 = vadd.f32 %v583, %v584
      %v586 = vmul.f32 %v585, %v578
      %587 = vst [vmem:[#allocation2 + $0x10] sm:$0x1] %v586
      %v588 = vmul.f32 %v570, %v446
      %v589 = vrot.slane %v588, 4
      %v590 = vadd.f32 %v588, %v589
      %v591 = vrot.slane %v590, 2
      %v592 = vadd.f32 %v590, %v591
      %v593 = vrot.slane %v592, 1
      %v594 = vadd.f32 %v592, %v593
      %v595 = vmul.f32 %v594, %v578
      %596 = vst [vmem:[#allocation2 + $0x11] sm:$0x1] %v595
      %v597 = vmul.f32 %v570, %v419
      %v598 = vrot.slane %v597, 4
      %v599 = vadd.f32 %v597, %v598
      %v600 = vrot.slane %v599, 2
      %v601 = vadd.f32 %v599, %v600
      %v602 = vrot.slane %v601, 1
      %v603 = vadd.f32 %v601, %v602
      %v604 = vmul.f32 %v603, %v578
      %605 = vst [vmem:[#allocation2 + $0x12] sm:$0x1] %v604
      %v606 = vmul.f32 %v570, %v424
      %v607 = vrot.slane %v606, 4
      %v608 = vadd.f32 %v606, %v607
      %v609 = vrot.slane %v608, 2
      %v610 = vadd.f32 %v608, %v609
      %v611 = vrot.slane %v610, 1
      %v612 = vadd.f32 %v610, %v611
      %v613 = vmul.f32 %v612, %v578
      %614 = vst [vmem:[#allocation2 + $0x13] sm:$0x1] %v613
      %v615 = vmul.f32 %v570, %v444
      %v616 = vrot.slane %v615, 4
      %v617 = vadd.f32 %v615, %v616
      %v618 = vrot.slane %v617, 2
      %v619 = vadd.f32 %v617, %v618
      %v620 = vrot.slane %v619, 1
      %v621 = vadd.f32 %v619, %v620
      %v622 = vmul.f32 %v621, %v578
      %623 = vst [vmem:[#allocation2 + $0x14] sm:$0x1] %v622
      %v624 = vlaneseq
      %v625 = vshrl.u32 %v624, 7
      %v626 = vsub.s32 5, %v625
      %v627 = vrot.slane %v523, %v626
      %v628 = vmul.f32 %v445, %v627
      %v629 = vlaneseq
      %v630 = vshrl.u32 %v629, 7
      %v631 = vsub.s32 6, %v630
      %v632 = vrot.slane %v523, %v631
      %v633 = vmul.f32 %v446, %v632
      %v634 = vadd.f32 %v628, %v633
      %v635 = vlaneseq
      %v636 = vshrl.u32 %v635, 7
      %v637 = vsub.s32 7, %v636
      %v638 = vrot.slane %v523, %v637
      %v639 = vmul.f32 %v419, %v638
      %v640 = vadd.f32 %v634, %v639
      %v641 = vlaneseq
      %v642 = vshrl.u32 %v641, 7
      %v643 = vsub.s32 0, %v642
      %v644 = vrot.slane %v528, %v643
      %v645 = vmul.f32 %v424, %v644
      %v646 = vadd.f32 %v640, %v645
      %v647 = vlaneseq
      %v648 = vshrl.u32 %v647, 7
      %v649 = vsub.s32 1, %v648
      %v650 = vrot.slane %v528, %v649
      %v651 = vmul.f32 %v444, %v650
      %v652 = vadd.f32 %v646, %v651
      %v653 = vmul.f32 %v652, 0.4472136
      %v654 = vadd.f32 %v653, %v401
      %v655 = vrot.slane %v654, 4
      %v656 = vmax.f32 %v654, %v655
      %v657 = vrot.slane %v656, 2
      %v658 = vmax.f32 %v656, %v657
      %v659 = vrot.slane %v658, 1
      %v660 = vmax.f32 %v658, %v659
      %v661 = vsub.f32 %v654, %v660
      %v662 = vmul.f32 %v661, 1.442695
      %v663 = vpow.pop %v662
      %v664 = vrot.slane %v663, 4
      %v665 = vadd.f32 %v663, %v664
      %v666 = vrot.slane %v665, 2
      %v667 = vadd.f32 %v665, %v666
      %v668 = vrot.slane %v667, 1
      %v669 = vadd.f32 %v667, %v668
      %v670 = vrcp.pop %v669
      %v671 = vmul.f32 1.0, %v670
      %v672 = vmul.f32 %v663, %v445
      %v673 = vrot.slane %v672, 4
      %v674 = vadd.f32 %v672, %v673
      %v675 = vrot.slane %v674, 2
      %v676 = vadd.f32 %v674, %v675
      %v677 = vrot.slane %v676, 1
      %v678 = vadd.f32 %v676, %v677
      %v679 = vmul.f32 %v678, %v671
      %680 = vst [vmem:[#allocation2 + $0x15] sm:$0x1] %v679
      %v681 = vmul.f32 %v663, %v446
      %v682 = vrot.slane %v681, 4
      %v683 = vadd.f32 %v681, %v682
      %v684 = vrot.slane %v683, 2
      %v685 = vadd.f32 %v683, %v684
      %v686 = vrot.slane %v685, 1
      %v687 = vadd.f32 %v685, %v686
      %v688 = vmul.f32 %v687, %v671
      %689 = vst [vmem:[#allocation2 + $0x16] sm:$0x1] %v688
      %v690 = vmul.f32 %v663, %v419
      %v691 = vrot.slane %v690, 4
      %v692 = vadd.f32 %v690, %v691
      %v693 = vrot.slane %v692, 2
      %v694 = vadd.f32 %v692, %v693
      %v695 = vrot.slane %v694, 1
      %v696 = vadd.f32 %v694, %v695
      %v697 = vmul.f32 %v696, %v671
      %698 = vst [vmem:[#allocation2 + $0x17] sm:$0x1] %v697
      %v699 = vmul.f32 %v663, %v424
      %v700 = vrot.slane %v699, 4
      %v701 = vadd.f32 %v699, %v700
      %v702 = vrot.slane %v701, 2
      %v703 = vadd.f32 %v701, %v702
      %v704 = vrot.slane %v703, 1
      %v705 = vadd.f32 %v703, %v704
      %v706 = vmul.f32 %v705, %v671
      %707 = vst [vmem:[#allocation2 + $0x18] sm:$0x1] %v706
      %v708 = vmul.f32 %v663, %v444
      %v709 = vrot.slane %v708, 4
      %v710 = vadd.f32 %v708, %v709
      %v711 = vrot.slane %v710, 2
      %v712 = vadd.f32 %v710, %v711
      %v713 = vrot.slane %v712, 1
      %v714 = vadd.f32 %v712, %v713
      %v715 = vmul.f32 %v714, %v671
      %716 = vst [vmem:[#allocation2 + $0x19] sm:$0x1] %v715
      %v717 = vlaneseq
      %v718 = vshrl.u32 %v717, 7
      %v719 = vsub.s32 2, %v718
      %v720 = vrot.slane %v528, %v719
      %v721 = vmul.f32 %v445, %v720
      %v722 = vlaneseq
      %v723 = vshrl.u32 %v722, 7
      %v724 = vsub.s32 3, %v723
      %v725 = vrot.slane %v528, %v724
      %v726 = vmul.f32 %v446, %v725
      %v727 = vadd.f32 %v721, %v726
      %v728 = vlaneseq
      %v729 = vshrl.u32 %v728, 7
      %v730 = vsub.s32 4, %v729
      %v731 = vrot.slane %v528, %v730
      %v732 = vmul.f32 %v419, %v731
      %v733 = vadd.f32 %v727, %v732
      %v734 = vlaneseq
      %v735 = vshrl.u32 %v734, 7
      %v736 = vsub.s32 5, %v735
      %v737 = vrot.slane %v528, %v736
      %v738 = vmul.f32 %v424, %v737
      %v739 = vadd.f32 %v733, %v738
      %v740 = vlaneseq
      %v741 = vshrl.u32 %v740, 7
      %v742 = vsub.s32 6, %v741
      %v743 = vrot.slane %v528, %v742
      %v744 = vmul.f32 %v444, %v743
      %v745 = vadd.f32 %v739, %v744
      %v746 = vmul.f32 %v745, 0.4472136
      %v747 = vadd.f32 %v746, %v401
      %v748 = vrot.slane %v747, 4
      %v749 = vmax.f32 %v747, %v748
      %v750 = vrot.slane %v749, 2
      %v751 = vmax.f32 %v749, %v750
      %v752 = vrot.slane %v751, 1
      %v753 = vmax.f32 %v751, %v752
      %v754 = vsub.f32 %v747, %v753
      %v755 = vmul.f32 %v754, 1.442695
      %v756 = vpow.pop %v755
      %v757 = vrot.slane %v756, 4
      %v758 = vadd.f32 %v756, %v757
      %v759 = vrot.slane %v758, 2
      %v760 = vadd.f32 %v758, %v759
      %v761 = vrot.slane %v760, 1
      %v762 = vadd.f32 %v760, %v761
      %v763 = vrcp.pop %v762
      %v764 = vmul.f32 1.0, %v763
      %v765 = vmul.f32 %v756, %v445
      %v766 = vrot.slane %v765, 4
      %v767 = vadd.f32 %v765, %v766
      %v768 = vrot.slane %v767, 2
      %v769 = vadd.f32 %v767, %v768
      %v770 = vrot.slane %v769, 1
      %v771 = vadd.f32 %v769, %v770
      %v772 = vmul.f32 %v771, %v764
      %773 = vst [vmem:[#allocation2 + $0x1a] sm:$0x1] %v772
      %v774 = vmul.f32 %v756, %v446
      %v775 = vrot.slane %v774, 4
      %v776 = vadd.f32 %v774, %v775
      %v777 = vrot.slane %v776, 2
      %v778 = vadd.f32 %v776, %v777
      %v779 = vrot.slane %v778, 1
      %v780 = vadd.f32 %v778, %v779
      %v781 = vmul.f32 %v780, %v764
      %782 = vst [vmem:[#allocation2 + $0x1b] sm:$0x1] %v781
      %v783 = vmul.f32 %v756, %v419
      %v784 = vrot.slane %v783, 4
      %v785 = vadd.f32 %v783, %v784
      %v786 = vrot.slane %v785, 2
      %v787 = vadd.f32 %v785, %v786
      %v788 = vrot.slane %v787, 1
      %v789 = vadd.f32 %v787, %v788
      %v790 = vmul.f32 %v789, %v764
      %791 = vst [vmem:[#allocation2 + $0x1c] sm:$0x1] %v790
      %v792 = vmul.f32 %v756, %v424
      %v793 = vrot.slane %v792, 4
      %v794 = vadd.f32 %v792, %v793
      %v795 = vrot.slane %v794, 2
      %v796 = vadd.f32 %v794, %v795
      %v797 = vrot.slane %v796, 1
      %v798 = vadd.f32 %v796, %v797
      %v799 = vmul.f32 %v798, %v764
      %800 = vst [vmem:[#allocation2 + $0x1d] sm:$0x1] %v799
      %v801 = vmul.f32 %v756, %v444
      %v802 = vrot.slane %v801, 4
      %v803 = vadd.f32 %v801, %v802
      %v804 = vrot.slane %v803, 2
      %v805 = vadd.f32 %v803, %v804
      %v806 = vrot.slane %v805, 1
      %v807 = vadd.f32 %v805, %v806
      %v808 = vmul.f32 %v807, %v764
      %809 = vst [vmem:[#allocation2 + $0x1e] sm:$0x1] %v808
      %v810 = vld [vmem:[%s5] sm:$0xff]
      %v811 = vld [vmem:[%s5 + $0x8] sm:$0xff]
      %v812 = vld [vmem:[%s5 + $0x10] sm:$0xff]
      %v813 = vld [vmem:[%s5 + $0x18] sm:$0xff]
      %v814 = vld [vmem:[%s5 + $0x20] sm:$0xff]
      %v815 = vld [vmem:[%s5 + $0x28] sm:$0xff]
      %v816 = vld [vmem:[%s5 + $0x30] sm:$0xff]
      %v817 = vld [vmem:[%s5 + $0x38] sm:$0xff]
      %v818 = vld [vmem:[%s5 + $0x40] sm:$0xff]
      %v819 = vld [vmem:[%s5 + $0x48] sm:$0xff]
      %v820 = vld [vmem:[%s5 + $0x50] sm:$0xff]
      %v821 = vld [vmem:[%s5 + $0x58] sm:$0xff]
      %v822 = vld [vmem:[%s5 + $0x60] sm:$0xff]
      %v823 = vld [vmem:[%s5 + $0x68] sm:$0xff]
      %v824 = vld [vmem:[%s5 + $0x70] sm:$0xff]
      %v825 = vld [vmem:[%s5 + $0x78] sm:$0xff]
      %v826 = vld [vmem:[%s5 + $0x80] sm:$0xff]
      %v827 = vld [vmem:[%s5 + $0x88] sm:$0xff]
      %v828 = vld [vmem:[%s5 + $0x90] sm:$0xff]
      %v829 = vld [vmem:[%s5 + $0x98] sm:$0xff]
      %v830 = vld [vmem:[%s5 + $0xa0] sm:$0xff]
      %v831 = vld [vmem:[%s5 + $0xa8] sm:$0xff]
      %v832 = vld [vmem:[%s5 + $0xb0] sm:$0xff]
      %v833 = vld [vmem:[%s5 + $0xb8] sm:$0xff]
      %v834 = vld [vmem:[%s5 + $0xc0] sm:$0xff]
      %v835 = vld [vmem:[%s5 + $0xc8] sm:$0xff]
      %v836 = vld [vmem:[%s5 + $0xd0] sm:$0xff]
      %v837 = vld [vmem:[%s5 + $0xd8] sm:$0xff]
      %v838 = vld [vmem:[%s5 + $0xe0] sm:$0xff]
      %v839 = vld [vmem:[%s5 + $0xe8] sm:$0xff]
      %v840 = vld [vmem:[%s5 + $0xf0] sm:$0xff]
      %v841 = vld [vmem:[%s5 + $0xf8] sm:$0xff]
      %v842 = vld [vmem:[#allocation2] sm:$0xff]
      %v843 = vld [vmem:[#allocation2 + $0x8] sm:$0xff]
      %v844 = vld [vmem:[#allocation2 + $0x10] sm:$0xff]
      %v845 = vld [vmem:[#allocation2 + $0x18] sm:$0xff]
      %vm846 = vcmask 261120
      %v848 = vsel %vm846, %v810, 0
      %v851 = vsel %vm846, %v811, 0
      %v854 = vsel %vm846, %v812, 0
      %v857 = vsel %vm846, %v813, 0
      %v860 = vsel %vm846, %v814, 0
      %v863 = vsel %vm846, %v815, 0
      %v866 = vsel %vm846, %v816, 0
      %v869 = vsel %vm846, %v817, 0
      %v872 = vsel %vm846, %v818, 0
      %v875 = vsel %vm846, %v819, 0
      %v878 = vsel %vm846, %v820, 0
      %v881 = vsel %vm846, %v821, 0
      %v884 = vsel %vm846, %v822, 0
      %v887 = vsel %vm846, %v823, 0
      %v890 = vsel %vm846, %v824, 0
      %v893 = vsel %vm846, %v825, 0
      %v896 = vsel %vm846, %v826, 0
      %v899 = vsel %vm846, %v827, 0
      %v902 = vsel %vm846, %v828, 0
      %v905 = vsel %vm846, %v829, 0
      %v908 = vsel %vm846, %v830, 0
      %v911 = vsel %vm846, %v831, 0
      %v914 = vsel %vm846, %v832, 0
      %v917 = vsel %vm846, %v833, 0
      %v920 = vsel %vm846, %v834, 0
      %v923 = vsel %vm846, %v835, 0
      %v926 = vsel %vm846, %v836, 0
      %v929 = vsel %vm846, %v837, 0
      %v932 = vsel %vm846, %v838, 0
      %v935 = vsel %vm846, %v839, 0
      %v938 = vsel %vm846, %v840, 0
      %v941 = vsel %vm846, %v841, 0
      %943 = vmatprep.subr.mxu0 0.0
      %944 = vmatpush1.msra.mxu0 %v842
      %945 = vmatprep.subr.mxu0 0.0
      %946 = vmatpush1.msra.mxu0 %v843
      %947 = vmatprep.subr.mxu0 0.0
      %948 = vmatpush1.msra.mxu0 %v844
      %949 = vmatprep.subr.mxu0 0.0
      %950 = vmatpush1.msra.mxu0 %v845
      %951 = vmatprep.subr.mxu0 0.0
      %952 = vmatpush1.msra.mxu0 0.0
      %953 = vmatprep.subr.mxu0 0.0
      %954 = vmatpush1.msra.mxu0 0.0
      %955 = vmatprep.subr.mxu0 0.0
      %956 = vmatpush1.msra.mxu0 0.0
      %957 = vmatprep.subr.mxu0 0.0
      %958 = vmatpush1.msra.mxu0 0.0
      %959 = vmatprep.subr.mxu0 0.0
      %960 = vmatpush1.msra.mxu0 0.0
      %961 = vmatprep.subr.mxu0 0.0
      %962 = vmatpush1.msra.mxu0 0.0
      %963 = vmatprep.subr.mxu0 0.0
      %964 = vmatpush1.msra.mxu0 0.0
      %965 = vmatprep.subr.mxu0 0.0
      %966 = vmatpush1.msra.mxu0 0.0
      %967 = vmatprep.subr.mxu0 0.0
      %968 = vmatpush1.msra.mxu0 0.0
      %969 = vmatprep.subr.mxu0 0.0
      %970 = vmatpush1.msra.mxu0 0.0
      %971 = vmatprep.subr.mxu0 0.0
      %972 = vmatpush1.msra.mxu0 0.0
      %973 = vmatprep.subr.mxu0 0.0
      %974 = vmatpush1.msra.mxu0 0.0
      %975 = vmatprep.subr.mxu0 0.0
      %976 = vmatpush1.msra.mxu0 0.0
      %977 = vmatprep.subr.mxu0 0.0
      %978 = vmatpush1.msra.mxu0 0.0
      %979 = vmatprep.subr.mxu0 0.0
      %980 = vmatpush1.msra.mxu0 0.0
      %981 = vmatprep.subr.mxu0 0.0
      %982 = vmatpush1.msra.mxu0 0.0
      %983 = vmatprep.subr.mxu0 0.0
      %984 = vmatpush1.msra.mxu0 0.0
      %985 = vmatprep.subr.mxu0 0.0
      %986 = vmatpush1.msra.mxu0 0.0
      %987 = vmatprep.subr.mxu0 0.0
      %988 = vmatpush1.msra.mxu0 0.0
      %989 = vmatprep.subr.mxu0 0.0
      %990 = vmatpush1.msra.mxu0 0.0
      %991 = vmatprep.subr.mxu0 0.0
      %992 = vmatpush1.msra.mxu0 0.0
      %993 = vmatprep.subr.mxu0 0.0
      %994 = vmatpush1.msra.mxu0 0.0
      %995 = vmatprep.subr.mxu0 0.0
      %996 = vmatpush1.msra.mxu0 0.0
      %997 = vmatprep.subr.mxu0 0.0
      %998 = vmatpush1.msra.mxu0 0.0
      %999 = vmatprep.subr.mxu0 0.0
      %1000 = vmatpush1.msra.mxu0 0.0
      %1001 = vmatprep.subr.mxu0 0.0
      %1002 = vmatpush1.msra.mxu0 0.0
      %1003 = vmatprep.subr.mxu0 0.0
      %1004 = vmatpush1.msra.mxu0 0.0
      %1005 = vmatprep.subr.mxu0 0.0
      %1006 = vmatpush1.msra.mxu0 0.0
      %1007 = vmatprep.mubr.f32.mxu0 0.0
      %1008 = vmatmul.mubr.f32.gmra.mrb[0].mxu0 %v848
      %v1009 = vpop.f32.mrb[0].mxu0
      %v1010 = vadd.f32 0.0, %v1009
      %v1011 = vpop.f32.mrb[0].mxu0
      %1012 = vmatprep.mubr.f32.mxu0 0.0
      %1013 = vmatmul.mubr.f32.gmra.mrb[0].mxu0 %v851
      %v1014 = vpop.f32.mrb[0].mxu0
      %v1015 = vadd.f32 0.0, %v1014
      %v1016 = vpop.f32.mrb[0].mxu0
      %1017 = vmatprep.mubr.f32.mxu0 0.0
      %1018 = vmatmul.mubr.f32.gmra.mrb[0].mxu0 %v854
      %v1019 = vpop.f32.mrb[0].mxu0
      %v1020 = vadd.f32 0.0, %v1019
      %v1021 = vpop.f32.mrb[0].mxu0
      %1022 = vmatprep.mubr.f32.mxu0 0.0
      %1023 = vmatmul.mubr.f32.gmra.mrb[0].mxu0 %v857
      %v1024 = vpop.f32.mrb[0].mxu0
      %v1025 = vadd.f32 0.0, %v1024
      %v1026 = vpop.f32.mrb[0].mxu0
      %1027 = vmatprep.mubr.f32.mxu0 0.0
      %1028 = vmatmul.mubr.f32.gmra.mrb[0].mxu0 %v860
      %v1029 = vpop.f32.mrb[0].mxu0
      %v1030 = vadd.f32 0.0, %v1029
      %v1031 = vpop.f32.mrb[0].mxu0
      %1032 = vmatprep.mubr.f32.mxu0 0.0
      %1033 = vmatmul.mubr.f32.gmra.mrb[0].mxu0 %v863
      %v1034 = vpop.f32.mrb[0].mxu0
      %v1035 = vadd.f32 0.0, %v1034
      %v1036 = vpop.f32.mrb[0].mxu0
      %1037 = vmatprep.mubr.f32.mxu0 0.0
      %1038 = vmatmul.mubr.f32.gmra.mrb[0].mxu0 %v866
      %v1039 = vpop.f32.mrb[0].mxu0
      %v1040 = vadd.f32 0.0, %v1039
      %v1041 = vpop.f32.mrb[0].mxu0
      %1042 = vmatprep.mubr.f32.mxu0 0.0
      %1043 = vmatmul.mubr.f32.gmra.mrb[0].mxu0 %v869
      %v1044 = vpop.f32.mrb[0].mxu0
      %v1045 = vadd.f32 0.0, %v1044
      %v1046 = vpop.f32.mrb[0].mxu0
      %1047 = vmatprep.mubr.f32.mxu0 0.0
      %1048 = vmatmul.mubr.f32.gmra.mrb[0].mxu0 %v872
      %v1049 = vpop.f32.mrb[0].mxu0
      %v1050 = vadd.f32 0.0, %v1049
      %v1051 = vpop.f32.mrb[0].mxu0
      %1052 = vmatprep.mubr.f32.mxu0 0.0
      %1053 = vmatmul.mubr.f32.gmra.mrb[0].mxu0 %v875
      %v1054 = vpop.f32.mrb[0].mxu0
      %v1055 = vadd.f32 0.0, %v1054
      %v1056 = vpop.f32.mrb[0].mxu0
      %1057 = vmatprep.mubr.f32.mxu0 0.0
      %1058 = vmatmul.mubr.f32.gmra.mrb[0].mxu0 %v878
      %v1059 = vpop.f32.mrb[0].mxu0
      %v1060 = vadd.f32 0.0, %v1059
      %v1061 = vpop.f32.mrb[0].mxu0
      %1062 = vmatprep.mubr.f32.mxu0 0.0
      %1063 = vmatmul.mubr.f32.gmra.mrb[0].mxu0 %v881
      %v1064 = vpop.f32.mrb[0].mxu0
      %v1065 = vadd.f32 0.0, %v1064
      %v1066 = vpop.f32.mrb[0].mxu0
      %1067 = vmatprep.mubr.f32.mxu0 0.0
      %1068 = vmatmul.mubr.f32.gmra.mrb[0].mxu0 %v884
      %v1069 = vpop.f32.mrb[0].mxu0
      %v1070 = vadd.f32 0.0, %v1069
      %v1071 = vpop.f32.mrb[0].mxu0
      %1072 = vmatprep.mubr.f32.mxu0 0.0
      %1073 = vmatmul.mubr.f32.gmra.mrb[0].mxu0 %v887
      %v1074 = vpop.f32.mrb[0].mxu0
      %v1075 = vadd.f32 0.0, %v1074
      %v1076 = vpop.f32.mrb[0].mxu0
      %1077 = vmatprep.mubr.f32.mxu0 0.0
      %1078 = vmatmul.mubr.f32.gmra.mrb[0].mxu0 %v890
      %v1079 = vpop.f32.mrb[0].mxu0
      %v1080 = vadd.f32 0.0, %v1079
      %v1081 = vpop.f32.mrb[0].mxu0
      %1082 = vmatprep.mubr.f32.mxu0 0.0
      %1083 = vmatmul.mubr.f32.gmra.mrb[0].mxu0 %v893
      %v1084 = vpop.f32.mrb[0].mxu0
      %v1085 = vadd.f32 0.0, %v1084
      %v1086 = vpop.f32.mrb[0].mxu0
      %1087 = vmatprep.mubr.f32.mxu0 0.0
      %1088 = vmatmul.mubr.f32.gmra.mrb[0].mxu0 %v896
      %v1089 = vpop.f32.mrb[0].mxu0
      %v1090 = vadd.f32 0.0, %v1089
      %v1091 = vpop.f32.mrb[0].mxu0
      %1092 = vmatprep.mubr.f32.mxu0 0.0
      %1093 = vmatmul.mubr.f32.gmra.mrb[0].mxu0 %v899
      %v1094 = vpop.f32.mrb[0].mxu0
      %v1095 = vadd.f32 0.0, %v1094
      %v1096 = vpop.f32.mrb[0].mxu0
      %1097 = vmatprep.mubr.f32.mxu0 0.0
      %1098 = vmatmul.mubr.f32.gmra.mrb[0].mxu0 %v902
      %v1099 = vpop.f32.mrb[0].mxu0
      %v1100 = vadd.f32 0.0, %v1099
      %v1101 = vpop.f32.mrb[0].mxu0
      %1102 = vmatprep.mubr.f32.mxu0 0.0
      %1103 = vmatmul.mubr.f32.gmra.mrb[0].mxu0 %v905
      %v1104 = vpop.f32.mrb[0].mxu0
      %v1105 = vadd.f32 0.0, %v1104
      %v1106 = vpop.f32.mrb[0].mxu0
      %1107 = vmatprep.mubr.f32.mxu0 0.0
      %1108 = vmatmul.mubr.f32.gmra.mrb[0].mxu0 %v908
      %v1109 = vpop.f32.mrb[0].mxu0
      %v1110 = vadd.f32 0.0, %v1109
      %v1111 = vpop.f32.mrb[0].mxu0
      %1112 = vmatprep.mubr.f32.mxu0 0.0
      %1113 = vmatmul.mubr.f32.gmra.mrb[0].mxu0 %v911
      %v1114 = vpop.f32.mrb[0].mxu0
      %v1115 = vadd.f32 0.0, %v1114
      %v1116 = vpop.f32.mrb[0].mxu0
      %1117 = vmatprep.mubr.f32.mxu0 0.0
      %1118 = vmatmul.mubr.f32.gmra.mrb[0].mxu0 %v914
      %v1119 = vpop.f32.mrb[0].mxu0
      %v1120 = vadd.f32 0.0, %v1119
      %v1121 = vpop.f32.mrb[0].mxu0
      %1122 = vmatprep.mubr.f32.mxu0 0.0
      %1123 = vmatmul.mubr.f32.gmra.mrb[0].mxu0 %v917
      %v1124 = vpop.f32.mrb[0].mxu0
      %v1125 = vadd.f32 0.0, %v1124
      %v1126 = vpop.f32.mrb[0].mxu0
      %1127 = vmatprep.mubr.f32.mxu0 0.0
      %1128 = vmatmul.mubr.f32.gmra.mrb[0].mxu0 %v920
      %v1129 = vpop.f32.mrb[0].mxu0
      %v1130 = vadd.f32 0.0, %v1129
      %v1131 = vpop.f32.mrb[0].mxu0
      %1132 = vmatprep.mubr.f32.mxu0 0.0
      %1133 = vmatmul.mubr.f32.gmra.mrb[0].mxu0 %v923
      %v1134 = vpop.f32.mrb[0].mxu0
      %v1135 = vadd.f32 0.0, %v1134
      %v1136 = vpop.f32.mrb[0].mxu0
      %1137 = vmatprep.mubr.f32.mxu0 0.0
      %1138 = vmatmul.mubr.f32.gmra.mrb[0].mxu0 %v926
      %v1139 = vpop.f32.mrb[0].mxu0
      %v1140 = vadd.f32 0.0, %v1139
      %v1141 = vpop.f32.mrb[0].mxu0
      %1142 = vmatprep.mubr.f32.mxu0 0.0
      %1143 = vmatmul.mubr.f32.gmra.mrb[0].mxu0 %v929
      %v1144 = vpop.f32.mrb[0].mxu0
      %v1145 = vadd.f32 0.0, %v1144
      %v1146 = vpop.f32.mrb[0].mxu0
      %1147 = vmatprep.mubr.f32.mxu0 0.0
      %1148 = vmatmul.mubr.f32.gmra.mrb[0].mxu0 %v932
      %v1149 = vpop.f32.mrb[0].mxu0
      %v1150 = vadd.f32 0.0, %v1149
      %v1151 = vpop.f32.mrb[0].mxu0
      %1152 = vmatprep.mubr.f32.mxu0 0.0
      %1153 = vmatmul.mubr.f32.gmra.mrb[0].mxu0 %v935
      %v1154 = vpop.f32.mrb[0].mxu0
      %v1155 = vadd.f32 0.0, %v1154
      %v1156 = vpop.f32.mrb[0].mxu0
      %1157 = vmatprep.mubr.f32.mxu0 0.0
      %1158 = vmatmul.mubr.f32.gmra.mrb[0].mxu0 %v938
      %v1159 = vpop.f32.mrb[0].mxu0
      %v1160 = vadd.f32 0.0, %v1159
      %v1161 = vpop.f32.mrb[0].mxu0
      %1162 = vmatprep.mubr.f32.mxu0 0.0
      %1163 = vmatmul.mubr.f32.gmra.mrb[0].mxu0 %v941
      %v1164 = vpop.f32.mrb[0].mxu0
      %v1165 = vadd.f32 0.0, %v1164
      %v1166 = vpop.f32.mrb[0].mxu0
      %1167 = vdwg.mxu0
      %v1168 = vmax.f32 %v1010, 0.0
      %v1169 = vmax.f32 %v1015, 0.0
      %v1170 = vmax.f32 %v1020, 0.0
      %v1171 = vmax.f32 %v1025, 0.0
      %v1172 = vmax.f32 %v1030, 0.0
      %v1173 = vmax.f32 %v1035, 0.0
      %v1174 = vmax.f32 %v1040, 0.0
      %v1175 = vmax.f32 %v1045, 0.0
      %v1176 = vmax.f32 %v1050, 0.0
      %v1177 = vmax.f32 %v1055, 0.0
      %v1178 = vmax.f32 %v1060, 0.0
      %v1179 = vmax.f32 %v1065, 0.0
      %v1180 = vmax.f32 %v1070, 0.0
      %v1181 = vmax.f32 %v1075, 0.0
      %v1182 = vmax.f32 %v1080, 0.0
      %v1183 = vmax.f32 %v1085, 0.0
      %v1184 = vmax.f32 %v1090, 0.0
      %v1185 = vmax.f32 %v1095, 0.0
      %v1186 = vmax.f32 %v1100, 0.0
      %v1187 = vmax.f32 %v1105, 0.0
      %v1188 = vmax.f32 %v1110, 0.0
      %v1189 = vmax.f32 %v1115, 0.0
      %v1190 = vmax.f32 %v1120, 0.0
      %v1191 = vmax.f32 %v1125, 0.0
      %v1192 = vmax.f32 %v1130, 0.0
      %v1193 = vmax.f32 %v1135, 0.0
      %v1194 = vmax.f32 %v1140, 0.0
      %v1195 = vmax.f32 %v1145, 0.0
      %v1196 = vmax.f32 %v1150, 0.0
      %v1197 = vmax.f32 %v1155, 0.0
      %v1198 = vmax.f32 %v1160, 0.0
      %v1199 = vmax.f32 %v1165, 0.0
      %v1200 = vld [vmem:[%s6] sm:$0xff]
      %v1201 = vld [vmem:[%s6 + $0x8] sm:$0xff]
      %v1202 = vld [vmem:[%s6 + $0x10] sm:$0xff]
      %v1203 = vld [vmem:[%s6 + $0x18] sm:$0xff]
      %v1204 = vld [vmem:[%s6 + $0x20] sm:$0xff]
      %v1205 = vld [vmem:[%s6 + $0x28] sm:$0xff]
      %v1206 = vld [vmem:[%s6 + $0x30] sm:$0xff]
      %v1207 = vld [vmem:[%s6 + $0x38] sm:$0xff]
      %v1208 = vld [vmem:[%s6 + $0x40] sm:$0xff]
      %v1209 = vld [vmem:[%s6 + $0x48] sm:$0xff]
      %v1210 = vld [vmem:[%s6 + $0x50] sm:$0xff]
      %v1211 = vld [vmem:[%s6 + $0x58] sm:$0xff]
      %v1212 = vld [vmem:[%s6 + $0x60] sm:$0xff]
      %v1213 = vld [vmem:[%s6 + $0x68] sm:$0xff]
      %v1214 = vld [vmem:[%s6 + $0x70] sm:$0xff]
      %v1215 = vld [vmem:[%s6 + $0x78] sm:$0xff]
      %v1216 = vld [vmem:[%s6 + $0x80] sm:$0xff]
      %v1217 = vld [vmem:[%s6 + $0x88] sm:$0xff]
      %v1218 = vld [vmem:[%s6 + $0x90] sm:$0xff]
      %v1219 = vld [vmem:[%s6 + $0x98] sm:$0xff]
      %v1220 = vld [vmem:[%s6 + $0xa0] sm:$0xff]
      %v1221 = vld [vmem:[%s6 + $0xa8] sm:$0xff]
      %v1222 = vld [vmem:[%s6 + $0xb0] sm:$0xff]
      %v1223 = vld [vmem:[%s6 + $0xb8] sm:$0xff]
      %v1224 = vld [vmem:[%s6 + $0xc0] sm:$0xff]
      %v1225 = vld [vmem:[%s6 + $0xc8] sm:$0xff]
      %v1226 = vld [vmem:[%s6 + $0xd0] sm:$0xff]
      %v1227 = vld [vmem:[%s6 + $0xd8] sm:$0xff]
      %v1228 = vld [vmem:[%s6 + $0xe0] sm:$0xff]
      %v1229 = vld [vmem:[%s6 + $0xe8] sm:$0xff]
      %v1230 = vld [vmem:[%s6 + $0xf0] sm:$0xff]
      %v1231 = vld [vmem:[%s6 + $0xf8] sm:$0xff]
      %v1232 = vld [vmem:[%s6 + $0x100] sm:$0xff]
      %v1233 = vld [vmem:[%s6 + $0x108] sm:$0xff]
      %v1234 = vld [vmem:[%s6 + $0x110] sm:$0xff]
      %v1235 = vld [vmem:[%s6 + $0x118] sm:$0xff]
      %v1236 = vld [vmem:[%s6 + $0x120] sm:$0xff]
      %v1237 = vld [vmem:[%s6 + $0x128] sm:$0xff]
      %v1238 = vld [vmem:[%s6 + $0x130] sm:$0xff]
      %v1239 = vld [vmem:[%s6 + $0x138] sm:$0xff]
      %v1240 = vld [vmem:[%s6 + $0x140] sm:$0xff]
      %v1241 = vld [vmem:[%s6 + $0x148] sm:$0xff]
      %v1242 = vld [vmem:[%s6 + $0x150] sm:$0xff]
      %v1243 = vld [vmem:[%s6 + $0x158] sm:$0xff]
      %v1244 = vld [vmem:[%s6 + $0x160] sm:$0xff]
      %v1245 = vld [vmem:[%s6 + $0x168] sm:$0xff]
      %v1246 = vld [vmem:[%s6 + $0x170] sm:$0xff]
      %v1247 = vld [vmem:[%s6 + $0x178] sm:$0xff]
      %v1248 = vld [vmem:[%s6 + $0x180] sm:$0xff]
      %v1249 = vld [vmem:[%s6 + $0x188] sm:$0xff]
      %v1250 = vld [vmem:[%s6 + $0x190] sm:$0xff]
      %v1251 = vld [vmem:[%s6 + $0x198] sm:$0xff]
      %v1252 = vld [vmem:[%s6 + $0x1a0] sm:$0xff]
      %v1253 = vld [vmem:[%s6 + $0x1a8] sm:$0xff]
      %v1254 = vld [vmem:[%s6 + $0x1b0] sm:$0xff]
      %v1255 = vld [vmem:[%s6 + $0x1b8] sm:$0xff]
      %v1256 = vld [vmem:[%s6 + $0x1c0] sm:$0xff]
      %v1257 = vld [vmem:[%s6 + $0x1c8] sm:$0xff]
      %v1258 = vld [vmem:[%s6 + $0x1d0] sm:$0xff]
      %v1259 = vld [vmem:[%s6 + $0x1d8] sm:$0xff]
      %v1260 = vld [vmem:[%s6 + $0x1e0] sm:$0xff]
      %v1261 = vld [vmem:[%s6 + $0x1e8] sm:$0xff]
      %v1262 = vld [vmem:[%s6 + $0x1f0] sm:$0xff]
      %v1263 = vld [vmem:[%s6 + $0x1f8] sm:$0xff]
      %v1264 = vld [vmem:[%s7] sm:$0xff]
      %v1265 = vld [vmem:[%s7 + $0x8] sm:$0xff]
      %v1266 = vld [vmem:[%s7 + $0x10] sm:$0xff]
      %v1267 = vld [vmem:[%s7 + $0x18] sm:$0xff]
      %v1268 = vld [vmem:[%s7 + $0x20] sm:$0xff]
      %v1269 = vld [vmem:[%s7 + $0x28] sm:$0xff]
      %v1270 = vld [vmem:[%s7 + $0x30] sm:$0xff]
      %v1271 = vld [vmem:[%s7 + $0x38] sm:$0xff]
      %v1272 = vld [vmem:[%s7 + $0x40] sm:$0xff]
      %v1273 = vld [vmem:[%s7 + $0x48] sm:$0xff]
      %v1274 = vld [vmem:[%s7 + $0x50] sm:$0xff]
      %v1275 = vld [vmem:[%s7 + $0x58] sm:$0xff]
      %v1276 = vld [vmem:[%s7 + $0x60] sm:$0xff]
      %v1277 = vld [vmem:[%s7 + $0x68] sm:$0xff]
      %v1278 = vld [vmem:[%s7 + $0x70] sm:$0xff]
      %v1279 = vld [vmem:[%s7 + $0x78] sm:$0xff]
      %v1280 = vld [vmem:[%s7 + $0x80] sm:$0xff]
      %v1281 = vld [vmem:[%s7 + $0x88] sm:$0xff]
      %v1282 = vld [vmem:[%s7 + $0x90] sm:$0xff]
      %v1283 = vld [vmem:[%s7 + $0x98] sm:$0xff]
      %v1284 = vld [vmem:[%s7 + $0xa0] sm:$0xff]
      %v1285 = vld [vmem:[%s7 + $0xa8] sm:$0xff]
      %v1286 = vld [vmem:[%s7 + $0xb0] sm:$0xff]
      %v1287 = vld [vmem:[%s7 + $0xb8] sm:$0xff]
      %v1288 = vld [vmem:[%s7 + $0xc0] sm:$0xff]
      %v1289 = vld [vmem:[%s7 + $0xc8] sm:$0xff]
      %v1290 = vld [vmem:[%s7 + $0xd0] sm:$0xff]
      %v1291 = vld [vmem:[%s7 + $0xd8] sm:$0xff]
      %v1292 = vld [vmem:[%s7 + $0xe0] sm:$0xff]
      %v1293 = vld [vmem:[%s7 + $0xe8] sm:$0xff]
      %v1294 = vld [vmem:[%s7 + $0xf0] sm:$0xff]
      %v1295 = vld [vmem:[%s7 + $0xf8] sm:$0xff]
      %1297 = vset.pattern.permute.xlu0 0
      %1298 = vperm.xlu0 %1297, %v1264
      %v1299 = vpop.permute.xlu0 %1298
      %1302 = vset.pattern.permute.xlu0 0
      %1303 = vperm.xlu0 %1302, %v1265
      %v1304 = vpop.permute.xlu0 %1303
      %1307 = vset.pattern.permute.xlu0 0
      %1308 = vperm.xlu0 %1307, %v1266
      %v1309 = vpop.permute.xlu0 %1308
      %1312 = vset.pattern.permute.xlu0 0
      %1313 = vperm.xlu0 %1312, %v1267
      %v1314 = vpop.permute.xlu0 %1313
      %1317 = vset.pattern.permute.xlu0 0
      %1318 = vperm.xlu0 %1317, %v1268
      %v1319 = vpop.permute.xlu0 %1318
      %1322 = vset.pattern.permute.xlu0 0
      %1323 = vperm.xlu0 %1322, %v1269
      %v1324 = vpop.permute.xlu0 %1323
      %1327 = vset.pattern.permute.xlu0 0
      %1328 = vperm.xlu0 %1327, %v1270
      %v1329 = vpop.permute.xlu0 %1328
      %1332 = vset.pattern.permute.xlu0 0
      %1333 = vperm.xlu0 %1332, %v1271
      %v1334 = vpop.permute.xlu0 %1333
      %1337 = vset.pattern.permute.xlu0 0
      %1338 = vperm.xlu0 %1337, %v1272
      %v1339 = vpop.permute.xlu0 %1338
      %1342 = vset.pattern.permute.xlu0 0
      %1343 = vperm.xlu0 %1342, %v1273
      %v1344 = vpop.permute.xlu0 %1343
      %1347 = vset.pattern.permute.xlu0 0
      %1348 = vperm.xlu0 %1347, %v1274
      %v1349 = vpop.permute.xlu0 %1348
      %1352 = vset.pattern.permute.xlu0 0
      %1353 = vperm.xlu0 %1352, %v1275
      %v1354 = vpop.permute.xlu0 %1353
      %1357 = vset.pattern.permute.xlu0 0
      %1358 = vperm.xlu0 %1357, %v1276
      %v1359 = vpop.permute.xlu0 %1358
      %1362 = vset.pattern.permute.xlu0 0
      %1363 = vperm.xlu0 %1362, %v1277
      %v1364 = vpop.permute.xlu0 %1363
      %1367 = vset.pattern.permute.xlu0 0
      %1368 = vperm.xlu0 %1367, %v1278
      %v1369 = vpop.permute.xlu0 %1368
      %1372 = vset.pattern.permute.xlu0 0
      %1373 = vperm.xlu0 %1372, %v1279
      %v1374 = vpop.permute.xlu0 %1373
      %1377 = vset.pattern.permute.xlu0 0
      %1378 = vperm.xlu0 %1377, %v1280
      %v1379 = vpop.permute.xlu0 %1378
      %1382 = vset.pattern.permute.xlu0 0
      %1383 = vperm.xlu0 %1382, %v1281
      %v1384 = vpop.permute.xlu0 %1383
      %1387 = vset.pattern.permute.xlu0 0
      %1388 = vperm.xlu0 %1387, %v1282
      %v1389 = vpop.permute.xlu0 %1388
      %1392 = vset.pattern.permute.xlu0 0
      %1393 = vperm.xlu0 %1392, %v1283
      %v1394 = vpop.permute.xlu0 %1393
      %1397 = vset.pattern.permute.xlu0 0
      %1398 = vperm.xlu0 %1397, %v1284
      %v1399 = vpop.permute.xlu0 %1398
      %1402 = vset.pattern.permute.xlu0 0
      %1403 = vperm.xlu0 %1402, %v1285
      %v1404 = vpop.permute.xlu0 %1403
      %1407 = vset.pattern.permute.xlu0 0
      %1408 = vperm.xlu0 %1407, %v1286
      %v1409 = vpop.permute.xlu0 %1408
      %1412 = vset.pattern.permute.xlu0 0
      %1413 = vperm.xlu0 %1412, %v1287
      %v1414 = vpop.permute.xlu0 %1413
      %1417 = vset.pattern.permute.xlu0 0
      %1418 = vperm.xlu0 %1417, %v1288
      %v1419 = vpop.permute.xlu0 %1418
      %1422 = vset.pattern.permute.xlu0 0
      %1423 = vperm.xlu0 %1422, %v1289
      %v1424 = vpop.permute.xlu0 %1423
      %1427 = vset.pattern.permute.xlu0 0
      %1428 = vperm.xlu0 %1427, %v1290
      %v1429 = vpop.permute.xlu0 %1428
      %1432 = vset.pattern.permute.xlu0 0
      %1433 = vperm.xlu0 %1432, %v1291
      %v1434 = vpop.permute.xlu0 %1433
      %1437 = vset.pattern.permute.xlu0 0
      %1438 = vperm.xlu0 %1437, %v1292
      %v1439 = vpop.permute.xlu0 %1438
      %1442 = vset.pattern.permute.xlu0 0
      %1443 = vperm.xlu0 %1442, %v1293
      %v1444 = vpop.permute.xlu0 %1443
      %1447 = vset.pattern.permute.xlu0 0
      %1448 = vperm.xlu0 %1447, %v1294
      %v1449 = vpop.permute.xlu0 %1448
      %1452 = vset.pattern.permute.xlu0 0
      %1453 = vperm.xlu0 %1452, %v1295
      %v1454 = vpop.permute.xlu0 %1453
      %1456 = vmatprep.subr.mxu0 0.0
      %1457 = vmatpush1.msra.mxu0 %v1168
      %1458 = vmatprep.subr.mxu0 0.0
      %1459 = vmatpush1.msra.mxu0 %v1169
      %1460 = vmatprep.subr.mxu0 0.0
      %1461 = vmatpush1.msra.mxu0 %v1170
      %1462 = vmatprep.subr.mxu0 0.0
      %1463 = vmatpush1.msra.mxu0 %v1171
      %1464 = vmatprep.subr.mxu0 0.0
      %1465 = vmatpush1.msra.mxu0 %v1172
      %1466 = vmatprep.subr.mxu0 0.0
      %1467 = vmatpush1.msra.mxu0 %v1173
      %1468 = vmatprep.subr.mxu0 0.0
      %1469 = vmatpush1.msra.mxu0 %v1174
      %1470 = vmatprep.subr.mxu0 0.0
      %1471 = vmatpush1.msra.mxu0 %v1175
      %1472 = vmatprep.subr.mxu0 0.0
      %1473 = vmatpush1.msra.mxu0 %v1176
      %1474 = vmatprep.subr.mxu0 0.0
      %1475 = vmatpush1.msra.mxu0 %v1177
      %1476 = vmatprep.subr.mxu0 0.0
      %1477 = vmatpush1.msra.mxu0 %v1178
      %1478 = vmatprep.subr.mxu0 0.0
      %1479 = vmatpush1.msra.mxu0 %v1179
      %1480 = vmatprep.subr.mxu0 0.0
      %1481 = vmatpush1.msra.mxu0 %v1180
      %1482 = vmatprep.subr.mxu0 0.0
      %1483 = vmatpush1.msra.mxu0 %v1181
      %1484 = vmatprep.subr.mxu0 0.0
      %1485 = vmatpush1.msra.mxu0 %v1182
      %1486 = vmatprep.subr.mxu0 0.0
      %1487 = vmatpush1.msra.mxu0 %v1183
      %1488 = vmatprep.subr.mxu0 0.0
      %1489 = vmatpush1.msra.mxu0 %v1184
      %1490 = vmatprep.subr.mxu0 0.0
      %1491 = vmatpush1.msra.mxu0 %v1185
      %1492 = vmatprep.subr.mxu0 0.0
      %1493 = vmatpush1.msra.mxu0 %v1186
      %1494 = vmatprep.subr.mxu0 0.0
      %1495 = vmatpush1.msra.mxu0 %v1187
      %1496 = vmatprep.subr.mxu0 0.0
      %1497 = vmatpush1.msra.mxu0 %v1188
      %1498 = vmatprep.subr.mxu0 0.0
      %1499 = vmatpush1.msra.mxu0 %v1189
      %1500 = vmatprep.subr.mxu0 0.0
      %1501 = vmatpush1.msra.mxu0 %v1190
      %1502 = vmatprep.subr.mxu0 0.0
      %1503 = vmatpush1.msra.mxu0 %v1191
      %1504 = vmatprep.subr.mxu0 0.0
      %1505 = vmatpush1.msra.mxu0 %v1192
      %1506 = vmatprep.subr.mxu0 0.0
      %1507 = vmatpush1.msra.mxu0 %v1193
      %1508 = vmatprep.subr.mxu0 0.0
      %1509 = vmatpush1.msra.mxu0 %v1194
      %1510 = vmatprep.subr.mxu0 0.0
      %1511 = vmatpush1.msra.mxu0 %v1195
      %1512 = vmatprep.subr.mxu0 0.0
      %1513 = vmatpush1.msra.mxu0 %v1196
      %1514 = vmatprep.subr.mxu0 0.0
      %1515 = vmatpush1.msra.mxu0 %v1197
      %1516 = vmatprep.subr.mxu0 0.0
      %1517 = vmatpush1.msra.mxu0 %v1198
      %1518 = vmatprep.subr.mxu0 0.0
      %1519 = vmatpush1.msra.mxu0 %v1199
      %1520 = vmatprep.mubr.f32.mxu0 %v1201
      %1521 = vmatmul.mubr.f32.gmra.mrb[0].mxu0 %v1200
      %v1522 = vpop.f32.mrb[0].mxu0
      %v1523 = vadd.f32 %v1299, %v1522
      %v1524 = vpop.f32.mrb[0].mxu0
      %1525 = vmatprep.mubr.f32.mxu0 %v1203
      %1526 = vmatmul.mubr.f32.gmra.mrb[0].mxu0 %v1202
      %v1527 = vpop.f32.mrb[0].mxu0
      %v1528 = vadd.f32 %v1304, %v1527
      %v1529 = vpop.f32.mrb[0].mxu0
      %1530 = vmatprep.mubr.f32.mxu0 %v1205
      %1531 = vmatmul.mubr.f32.gmra.mrb[0].mxu0 %v1204
      %v1532 = vpop.f32.mrb[0].mxu0
      %v1533 = vadd.f32 %v1309, %v1532
      %v1534 = vpop.f32.mrb[0].mxu0
      %1535 = vmatprep.mubr.f32.mxu0 %v1207
      %1536 = vmatmul.mubr.f32.gmra.mrb[0].mxu0 %v1206
      %v1537 = vpop.f32.mrb[0].mxu0
      %v1538 = vadd.f32 %v1314, %v1537
      %v1539 = vpop.f32.mrb[0].mxu0
      %1540 = vmatprep.mubr.f32.mxu0 %v1209
      %1541 = vmatmul.mubr.f32.gmra.mrb[0].mxu0 %v1208
      %v1542 = vpop.f32.mrb[0].mxu0
      %v1543 = vadd.f32 %v1319, %v1542
      %v1544 = vpop.f32.mrb[0].mxu0
      %1545 = vmatprep.mubr.f32.mxu0 %v1211
      %1546 = vmatmul.mubr.f32.gmra.mrb[0].mxu0 %v1210
      %v1547 = vpop.f32.mrb[0].mxu0
      %v1548 = vadd.f32 %v1324, %v1547
      %v1549 = vpop.f32.mrb[0].mxu0
      %1550 = vmatprep.mubr.f32.mxu0 %v1213
      %1551 = vmatmul.mubr.f32.gmra.mrb[0].mxu0 %v1212
      %v1552 = vpop.f32.mrb[0].mxu0
      %v1553 = vadd.f32 %v1329, %v1552
      %v1554 = vpop.f32.mrb[0].mxu0
      %1555 = vmatprep.mubr.f32.mxu0 %v1215
      %1556 = vmatmul.mubr.f32.gmra.mrb[0].mxu0 %v1214
      %v1557 = vpop.f32.mrb[0].mxu0
      %v1558 = vadd.f32 %v1334, %v1557
      %v1559 = vpop.f32.mrb[0].mxu0
      %1560 = vmatprep.mubr.f32.mxu0 %v1217
      %1561 = vmatmul.mubr.f32.gmra.mrb[0].mxu0 %v1216
      %v1562 = vpop.f32.mrb[0].mxu0
      %v1563 = vadd.f32 %v1339, %v1562
      %v1564 = vpop.f32.mrb[0].mxu0
      %1565 = vmatprep.mubr.f32.mxu0 %v1219
      %1566 = vmatmul.mubr.f32.gmra.mrb[0].mxu0 %v1218
      %v1567 = vpop.f32.mrb[0].mxu0
      %v1568 = vadd.f32 %v1344, %v1567
      %v1569 = vpop.f32.mrb[0].mxu0
      %1570 = vmatprep.mubr.f32.mxu0 %v1221
      %1571 = vmatmul.mubr.f32.gmra.mrb[0].mxu0 %v1220
      %v1572 = vpop.f32.mrb[0].mxu0
      %v1573 = vadd.f32 %v1349, %v1572
      %v1574 = vpop.f32.mrb[0].mxu0
      %1575 = vmatprep.mubr.f32.mxu0 %v1223
      %1576 = vmatmul.mubr.f32.gmra.mrb[0].mxu0 %v1222
      %v1577 = vpop.f32.mrb[0].mxu0
      %v1578 = vadd.f32 %v1354, %v1577
      %v1579 = vpop.f32.mrb[0].mxu0
      %1580 = vmatprep.mubr.f32.mxu0 %v1225
      %1581 = vmatmul.mubr.f32.gmra.mrb[0].mxu0 %v1224
      %v1582 = vpop.f32.mrb[0].mxu0
      %v1583 = vadd.f32 %v1359, %v1582
      %v1584 = vpop.f32.mrb[0].mxu0
      %1585 = vmatprep.mubr.f32.mxu0 %v1227
      %1586 = vmatmul.mubr.f32.gmra.mrb[0].mxu0 %v1226
      %v1587 = vpop.f32.mrb[0].mxu0
      %v1588 = vadd.f32 %v1364, %v1587
      %v1589 = vpop.f32.mrb[0].mxu0
      %1590 = vmatprep.mubr.f32.mxu0 %v1229
      %1591 = vmatmul.mubr.f32.gmra.mrb[0].mxu0 %v1228
      %v1592 = vpop.f32.mrb[0].mxu0
      %v1593 = vadd.f32 %v1369, %v1592
      %v1594 = vpop.f32.mrb[0].mxu0
      %1595 = vmatprep.mubr.f32.mxu0 %v1231
      %1596 = vmatmul.mubr.f32.gmra.mrb[0].mxu0 %v1230
      %v1597 = vpop.f32.mrb[0].mxu0
      %v1598 = vadd.f32 %v1374, %v1597
      %v1599 = vpop.f32.mrb[0].mxu0
      %1600 = vmatprep.mubr.f32.mxu0 %v1233
      %1601 = vmatmul.mubr.f32.gmra.mrb[0].mxu0 %v1232
      %v1602 = vpop.f32.mrb[0].mxu0
      %v1603 = vadd.f32 %v1379, %v1602
      %v1604 = vpop.f32.mrb[0].mxu0
      %1605 = vmatprep.mubr.f32.mxu0 %v1235
      %1606 = vmatmul.mubr.f32.gmra.mrb[0].mxu0 %v1234
      %v1607 = vpop.f32.mrb[0].mxu0
      %v1608 = vadd.f32 %v1384, %v1607
      %v1609 = vpop.f32.mrb[0].mxu0
      %1610 = vmatprep.mubr.f32.mxu0 %v1237
      %1611 = vmatmul.mubr.f32.gmra.mrb[0].mxu0 %v1236
      %v1612 = vpop.f32.mrb[0].mxu0
      %v1613 = vadd.f32 %v1389, %v1612
      %v1614 = vpop.f32.mrb[0].mxu0
      %1615 = vmatprep.mubr.f32.mxu0 %v1239
      %1616 = vmatmul.mubr.f32.gmra.mrb[0].mxu0 %v1238
      %v1617 = vpop.f32.mrb[0].mxu0
      %v1618 = vadd.f32 %v1394, %v1617
      %v1619 = vpop.f32.mrb[0].mxu0
      %1620 = vmatprep.mubr.f32.mxu0 %v1241
      %1621 = vmatmul.mubr.f32.gmra.mrb[0].mxu0 %v1240
      %v1622 = vpop.f32.mrb[0].mxu0
      %v1623 = vadd.f32 %v1399, %v1622
      %v1624 = vpop.f32.mrb[0].mxu0
      %1625 = vmatprep.mubr.f32.mxu0 %v1243
      %1626 = vmatmul.mubr.f32.gmra.mrb[0].mxu0 %v1242
      %v1627 = vpop.f32.mrb[0].mxu0
      %v1628 = vadd.f32 %v1404, %v1627
      %v1629 = vpop.f32.mrb[0].mxu0
      %1630 = vmatprep.mubr.f32.mxu0 %v1245
      %1631 = vmatmul.mubr.f32.gmra.mrb[0].mxu0 %v1244
      %v1632 = vpop.f32.mrb[0].mxu0
      %v1633 = vadd.f32 %v1409, %v1632
      %v1634 = vpop.f32.mrb[0].mxu0
      %1635 = vmatprep.mubr.f32.mxu0 %v1247
      %1636 = vmatmul.mubr.f32.gmra.mrb[0].mxu0 %v1246
      %v1637 = vpop.f32.mrb[0].mxu0
      %v1638 = vadd.f32 %v1414, %v1637
      %v1639 = vpop.f32.mrb[0].mxu0
      %1640 = vmatprep.mubr.f32.mxu0 %v1249
      %1641 = vmatmul.mubr.f32.gmra.mrb[0].mxu0 %v1248
      %v1642 = vpop.f32.mrb[0].mxu0
      %v1643 = vadd.f32 %v1419, %v1642
      %v1644 = vpop.f32.mrb[0].mxu0
      %1645 = vmatprep.mubr.f32.mxu0 %v1251
      %1646 = vmatmul.mubr.f32.gmra.mrb[0].mxu0 %v1250
      %v1647 = vpop.f32.mrb[0].mxu0
      %v1648 = vadd.f32 %v1424, %v1647
      %v1649 = vpop.f32.mrb[0].mxu0
      %1650 = vmatprep.mubr.f32.mxu0 %v1253
      %1651 = vmatmul.mubr.f32.gmra.mrb[0].mxu0 %v1252
      %v1652 = vpop.f32.mrb[0].mxu0
      %v1653 = vadd.f32 %v1429, %v1652
      %v1654 = vpop.f32.mrb[0].mxu0
      %1655 = vmatprep.mubr.f32.mxu0 %v1255
      %1656 = vmatmul.mubr.f32.gmra.mrb[0].mxu0 %v1254
      %v1657 = vpop.f32.mrb[0].mxu0
      %v1658 = vadd.f32 %v1434, %v1657
      %v1659 = vpop.f32.mrb[0].mxu0
      %1660 = vmatprep.mubr.f32.mxu0 %v1257
      %1661 = vmatmul.mubr.f32.gmra.mrb[0].mxu0 %v1256
      %v1662 = vpop.f32.mrb[0].mxu0
      %v1663 = vadd.f32 %v1439, %v1662
      %v1664 = vpop.f32.mrb[0].mxu0
      %1665 = vmatprep.mubr.f32.mxu0 %v1259
      %1666 = vmatmul.mubr.f32.gmra.mrb[0].mxu0 %v1258
      %v1667 = vpop.f32.mrb[0].mxu0
      %v1668 = vadd.f32 %v1444, %v1667
      %v1669 = vpop.f32.mrb[0].mxu0
      %1670 = vmatprep.mubr.f32.mxu0 %v1261
      %1671 = vmatmul.mubr.f32.gmra.mrb[0].mxu0 %v1260
      %v1672 = vpop.f32.mrb[0].mxu0
      %v1673 = vadd.f32 %v1449, %v1672
      %v1674 = vpop.f32.mrb[0].mxu0
      %1675 = vmatprep.mubr.f32.mxu0 %v1263
      %1676 = vmatmul.mubr.f32.gmra.mrb[0].mxu0 %v1262
      %v1677 = vpop.f32.mrb[0].mxu0
      %v1678 = vadd.f32 %v1454, %v1677
      %v1679 = vpop.f32.mrb[0].mxu0
      %1680 = vdwg.mxu0
      %v1681 = vmax.f32 %v1523, 0.0
      %v1682 = vmax.f32 %v1528, 0.0
      %v1683 = vmax.f32 %v1533, 0.0
      %v1684 = vmax.f32 %v1538, 0.0
      %v1685 = vmax.f32 %v1543, 0.0
      %v1686 = vmax.f32 %v1548, 0.0
      %v1687 = vmax.f32 %v1553, 0.0
      %v1688 = vmax.f32 %v1558, 0.0
      %v1689 = vmax.f32 %v1563, 0.0
      %v1690 = vmax.f32 %v1568, 0.0
      %v1691 = vmax.f32 %v1573, 0.0
      %v1692 = vmax.f32 %v1578, 0.0
      %v1693 = vmax.f32 %v1583, 0.0
      %v1694 = vmax.f32 %v1588, 0.0
      %v1695 = vmax.f32 %v1593, 0.0
      %v1696 = vmax.f32 %v1598, 0.0
      %v1697 = vmax.f32 %v1603, 0.0
      %v1698 = vmax.f32 %v1608, 0.0
      %v1699 = vmax.f32 %v1613, 0.0
      %v1700 = vmax.f32 %v1618, 0.0
      %v1701 = vmax.f32 %v1623, 0.0
      %v1702 = vmax.f32 %v1628, 0.0
      %v1703 = vmax.f32 %v1633, 0.0
      %v1704 = vmax.f32 %v1638, 0.0
      %v1705 = vmax.f32 %v1643, 0.0
      %v1706 = vmax.f32 %v1648, 0.0
      %v1707 = vmax.f32 %v1653, 0.0
      %v1708 = vmax.f32 %v1658, 0.0
      %v1709 = vmax.f32 %v1663, 0.0
      %v1710 = vmax.f32 %v1668, 0.0
      %v1711 = vmax.f32 %v1673, 0.0
      %v1712 = vmax.f32 %v1678, 0.0
      %v1713 = vld [vmem:[%s8] sm:$0xff]
      %v1714 = vld [vmem:[%s9] sm:$0xf]
      %1716 = vset.pattern.permute.xlu0 0
      %1717 = vperm.xlu0 %1716, %v1714
      %v1718 = vpop.permute.xlu0 %1717
      %v1721 = vcombine.high %v1713, %v1713
      %1723 = vmatprep.subr.mxu0 0.0
      %1724 = vmatpush1.msra.mxu0 %v1681
      %1725 = vmatprep.subr.mxu0 0.0
      %1726 = vmatpush1.msra.mxu0 %v1682
      %1727 = vmatprep.subr.mxu0 0.0
      %1728 = vmatpush1.msra.mxu0 %v1683
      %1729 = vmatprep.subr.mxu0 0.0
      %1730 = vmatpush1.msra.mxu0 %v1684
      %1731 = vmatprep.subr.mxu0 0.0
      %1732 = vmatpush1.msra.mxu0 %v1685
      %1733 = vmatprep.subr.mxu0 0.0
      %1734 = vmatpush1.msra.mxu0 %v1686
      %1735 = vmatprep.subr.mxu0 0.0
      %1736 = vmatpush1.msra.mxu0 %v1687
      %1737 = vmatprep.subr.mxu0 0.0
      %1738 = vmatpush1.msra.mxu0 %v1688
      %1739 = vmatprep.subr.mxu0 0.0
      %1740 = vmatpush1.msra.mxu0 %v1689
      %1741 = vmatprep.subr.mxu0 0.0
      %1742 = vmatpush1.msra.mxu0 %v1690
      %1743 = vmatprep.subr.mxu0 0.0
      %1744 = vmatpush1.msra.mxu0 %v1691
      %1745 = vmatprep.subr.mxu0 0.0
      %1746 = vmatpush1.msra.mxu0 %v1692
      %1747 = vmatprep.subr.mxu0 0.0
      %1748 = vmatpush1.msra.mxu0 %v1693
      %1749 = vmatprep.subr.mxu0 0.0
      %1750 = vmatpush1.msra.mxu0 %v1694
      %1751 = vmatprep.subr.mxu0 0.0
      %1752 = vmatpush1.msra.mxu0 %v1695
      %1753 = vmatprep.subr.mxu0 0.0
      %1754 = vmatpush1.msra.mxu0 %v1696
      %1755 = vmatprep.subr.mxu0 0.0
      %1756 = vmatpush1.msra.mxu0 %v1697
      %1757 = vmatprep.subr.mxu0 0.0
      %1758 = vmatpush1.msra.mxu0 %v1698
      %1759 = vmatprep.subr.mxu0 0.0
      %1760 = vmatpush1.msra.mxu0 %v1699
      %1761 = vmatprep.subr.mxu0 0.0
      %1762 = vmatpush1.msra.mxu0 %v1700
      %1763 = vmatprep.subr.mxu0 0.0
      %1764 = vmatpush1.msra.mxu0 %v1701
      %1765 = vmatprep.subr.mxu0 0.0
      %1766 = vmatpush1.msra.mxu0 %v1702
      %1767 = vmatprep.subr.mxu0 0.0
      %1768 = vmatpush1.msra.mxu0 %v1703
      %1769 = vmatprep.subr.mxu0 0.0
      %1770 = vmatpush1.msra.mxu0 %v1704
      %1771 = vmatprep.subr.mxu0 0.0
      %1772 = vmatpush1.msra.mxu0 %v1705
      %1773 = vmatprep.subr.mxu0 0.0
      %1774 = vmatpush1.msra.mxu0 %v1706
      %1775 = vmatprep.subr.mxu0 0.0
      %1776 = vmatpush1.msra.mxu0 %v1707
      %1777 = vmatprep.subr.mxu0 0.0
      %1778 = vmatpush1.msra.mxu0 %v1708
      %1779 = vmatprep.subr.mxu0 0.0
      %1780 = vmatpush1.msra.mxu0 %v1709
      %1781 = vmatprep.subr.mxu0 0.0
      %1782 = vmatpush1.msra.mxu0 %v1710
      %1783 = vmatprep.subr.mxu0 0.0
      %1784 = vmatpush1.msra.mxu0 %v1711
      %1785 = vmatprep.subr.mxu0 0.0
      %1786 = vmatpush1.msra.mxu0 %v1712
      %1787 = vmatprep.mubr.f32.mxu0 %v1721
      %1788 = vmatmul.mubr.f32.gmra.mrb[0].mxu0 %v1713
      %v1789 = vpop.f32.mrb[0].mxu0
      %v1790 = vadd.f32 %v1718, %v1789
      %v1791 = vpop.f32.mrb[0].mxu0
      %1792 = vdwg.mxu0
      %v1793 = vtanh.pop %v1790
      %v1794 = vadd.f32 %v1793, 1.0
      %v1795 = vmul.f32 %v1794, 11.0
      %v1796 = vadd.f32 %v1795, -20.0
      %v1797 = vmul.f32 %v1796, 1.442695
      %v1798 = vpow.pop %v1797
      %v1799 = vld [vmem:[%s390] sm:$0x3]
      %v1801 = vrot.slane %v1799, 6
      %v1803 = vmul.f32 %v1798, %v1801
      %v1805 = vrot.slane %v1803, 2
      %v1807 = vadd.f32 %v1793, %v1805
      %v1808 = vtanh.pop %v1807
      %v1809 = vmul.f32 %v1799, -0.5
      %v1810 = vmul.f32 %v1809, %v1799
      %v1812 = vrot.slane %v1796, 2
      %v1814 = vsub.f32 %v1810, %v1812
      %v1815 = vsub.f32 %v1814, 0.9189385
      %v1816 = vmul.f32 %v1808, %v1808
      %v1817 = vsub.f32 1.0, %v1816
      %v1818 = vadd.f32 %v1817, 1e-07
      %v1819 = vlog2.pop %v1818
      %v1820 = vmul.f32 %v1819, 0.6931472
      %v1821 = vsub.f32 %v1815, %v1820
      %vm1822 = vcmask 1041408
      %v1823 = vsel %vm1822, %v1821, 0.0
      %v1824 = vrot.slane %v1823, 4
      %v1825 = vadd.f32 %v1823, %v1824
      %v1826 = vrot.slane %v1825, 2
      %v1827 = vadd.f32 %v1825, %v1826
      %v1828 = vrot.slane %v1827, 1
      %v1829 = vadd.f32 %v1827, %v1828
      %v1830 = vsel %vm1822, %v1808, %v1829
      %1831 = vst [vmem:[%s394] sm:$0x7] %v1830
      %p1832 = scmp.lt.s32.totalorder %s21, 1
      %s1833 = scalar_select %p1832, %s21, 1
      %s1834 = smul.addr %s1833, 4
      %s1835 = scalar_lea.vmem %s10, %s1834
      // Predicated region
      $region61: #{actor_forward.1} parent=59 // pred_check
        %p1836 = pneg %p264
      $region62: #{actor_forward.1} parent=59 // pred_check_branch
        %1838 = sbr.rel (%p1836) target = $region64
      $region63: #{actor_forward.1} parent=59 // pred_region
        _
      $region64: #{actor_forward.1} parent=59 // pred_fallthru
        _
    $region60: #{actor_forward.1} parent=5 // pred_fallthru
      _
    %p1839 = scmp.le.s32.totalorder 2, %s16
    // Predicated region
    $region65: #{actor_forward.1} parent=5 // pred_check
      %p1840 = pneg %p1839
    $region66: #{actor_forward.1} parent=5 // pred_check_branch
      %1842 = sbr.rel (%p1840) target = $region68
    $region67: #{actor_forward.1} parent=5 // pred_region
      %s1843 = ssub.s32 %s16, 2
      // Predicated region
      $region69: #{actor_forward.1} parent=67 // pred_check
        %p1844 = pneg %p270
      $region70: #{actor_forward.1} parent=67 // pred_check_branch
        %1846 = sbr.rel (%p1844) target = $region72
      $region71: #{actor_forward.1} parent=67 // pred_region
        %p1847 = scmp.lt.s32.totalorder %s22, 1
        %s1848 = scalar_select %p1847, %s22, 1
        %s1849 = smul.addr %s1848, 4
        %s1850 = scalar_lea.vmem %s10, %s1849
      $region72: #{actor_forward.1} parent=67 // pred_fallthru
        _
    $region68: #{actor_forward.1} parent=5 // pred_fallthru
      _
  $region6: #{actor_forward.1} parent=0 // loop_footer
    %s20 = sadd.s32 1, %s16
  $region7: #{actor_forward.1} parent=0 // loop_footer_branch
    %15 = sbr.rel target = $region3
  $region8: #{actor_forward.1} parent=0 // loop_exit
    _

</llo_original>
